<compile_context>
chip_gen: v7x
topology: tpu7x:2x2x1
jax: 0.10.0
libtpu: 0.0.40
codegen_flags: <defaults>
</compile_context>

<pallas_src>
import jax
import jax.numpy as jnp
from jax.experimental import pallas as pl
from jax.experimental.pallas import tpu as pltpu


def dtanh_kernel(x_ref, w1_ref, w2_ref, w3_ref, b1_ref, b2_ref, b3_ref,
                 r1w_ref, r1b_ref, r2w_ref, r2b_ref, out_ref):
    """One batch block, batch on lanes.

    x_ref   : (N*F, TB)   input, sublane index = n*F + f
    w?_ref  : (N*d, N*C)  stacked PermEqui2_mean weight  I(x)Gamma - (1/N)*1(x)Lambda
    b?_ref  : (N*d, 1)    stacked Gamma bias
    r1w_ref : (d, d)      ro head weights, PyTorch (out, in) orientation
    r2w_ref : (out, d)
    out_ref : (out, TB)
    """
    f32 = jnp.float32

    # phi: three PermEqui2_mean + Tanh layers, each one dense MXU matmul.
    h = jnp.tanh(jnp.dot(w1_ref[...], x_ref[...], preferred_element_type=f32)
                 + b1_ref[...])                                   # (N*d, TB)
    h = jnp.tanh(jnp.dot(w2_ref[...], h, preferred_element_type=f32)
                 + b2_ref[...])                                   # (N*d, TB)
    h = jnp.tanh(jnp.dot(w3_ref[...], h, preferred_element_type=f32)
                 + b3_ref[...])                                   # (N*d, TB)

    # Set max-pool: rows [n*d, (n+1)*d) hold set element n.  d is a multiple of
    # 8, so these slices are sublane-tile aligned (plain VPU maxes, no relayout).
    d = r1w_ref.shape[0]
    n_set = h.shape[0] // d
    pooled = h[0:d, :]
    for n in range(1, n_set):
        pooled = jnp.maximum(pooled, h[n * d:(n + 1) * d, :])     # (d, TB)

    # ro head: Dropout -> Linear(d,d) -> Tanh -> Dropout -> Linear(d,40).
    # TODO(synk): training-mode dropout (p=0.5) not implemented (eval-mode identity).
    r = jnp.tanh(jnp.dot(r1w_ref[...], pooled, preferred_element_type=f32)
                 + r1b_ref[...])                                  # (d, TB)
    out_ref[...] = (jnp.dot(r2w_ref[...], r, preferred_element_type=f32)
                    + r2b_ref[...])                               # (out, TB)


def _pick_tb(B):
    """Lane-dense batch blocks: TB is a multiple of 128 (vreg lane width).
    Large batches aim for ~8 grid steps (>= 4 per v7x TensorCore so input DMA
    overlaps compute) with TB capped at 512; per-step VMEM stays ~3 MiB, safe
    under v5e's 16 MiB / v7x's 32 MiB default scoped limits."""
    b_pad = ((B + 127) // 128) * 128
    if b_pad <= 256:
        return int(b_pad)
    tb = ((pl.cdiv(b_pad, 8) + 127) // 128) * 128
    return int(max(128, min(512, tb)))


def _rep(arr):
    # Whole-array block with a constant index map: DMA'd to VMEM once, then
    # resident for every grid step (no per-step re-DMA).
    return pl.BlockSpec(arr.shape, lambda b: (0, 0))


def dtanh_forward(x, params, tb=None):
    B, N, F = x.shape
    d = params["g1w"].shape[0]
    out_dim = params["r2w"].shape[0]

    if tb is None:
        tb = _pick_tb(B)
    grid_b = pl.cdiv(B, tb)
    B_pad = grid_b * tb

    # Lane-dense input: fold (N, F) into the sublane axis, batch onto lanes.
    xt = x.reshape(B, N * F).T                                    # (N*F, B)
    if B_pad != B:
        xt = jnp.pad(xt, ((0, 0), (0, B_pad - B)))

    # Pack each PermEqui2_mean layer as one dense weight (static, wrapper-side):
    #   y_n = Gamma h_n + b - Lambda mean_m h_m
    #       = sum_m [Gamma*delta_nm - Lambda/N] h_m + b
    #   => W = I_N (x) Gamma - (1/N) 1_{NxN} (x) Lambda, shape (N*out, N*in).
    eye_n = jnp.eye(N, dtype=jnp.float32)
    mean_n = jnp.full((N, N), 1.0 / N, dtype=jnp.float32)

    def pe2_weight(gw, lw):
        return jnp.kron(eye_n, gw) - jnp.kron(mean_n, lw)

    w1 = pe2_weight(params["g1w"], params["l1w"])                 # (N*d, N*F)
    w2 = pe2_weight(params["g2w"], params["l2w"])                 # (N*d, N*d)
    w3 = pe2_weight(params["g3w"], params["l3w"])                 # (N*d, N*d)
    b1 = jnp.tile(params["g1b"], N).reshape(N * d, 1)
    b2 = jnp.tile(params["g2b"], N).reshape(N * d, 1)
    b3 = jnp.tile(params["g3b"], N).reshape(N * d, 1)
    r1w, r2w = params["r1w"], params["r2w"]
    r1b = params["r1b"].reshape(d, 1)
    r2b = params["r2b"].reshape(out_dim, 1)

    out_t = pl.pallas_call(
        dtanh_kernel,
        out_shape=jax.ShapeDtypeStruct((out_dim, B_pad), jnp.float32),
        grid_spec=pltpu.PrefetchScalarGridSpec(
            num_scalar_prefetch=0,
            grid=(grid_b,),
            in_specs=[
                pl.BlockSpec((N * F, tb), lambda b: (0, b)),      # x, lane-dense
                _rep(w1), _rep(w2), _rep(w3),
                _rep(b1), _rep(b2), _rep(b3),
                _rep(r1w), _rep(r1b), _rep(r2w), _rep(r2b),
            ],
            out_specs=pl.BlockSpec((out_dim, tb), lambda b: (0, b)),
        ),
        compiler_params=pltpu.CompilerParams(
            dimension_semantics=("parallel",)),
    )(xt, w1, w2, w3, b1, b2, b3, r1w, r1b, r2w, r2b)

    out = out_t.T                                                 # (B_pad, out)
    return out if B_pad == B else out[:B]


def init_params(key, x_dim, d_dim, out_dim=40):
    """PyTorch nn.Linear-style init U(-1/sqrt(in), 1/sqrt(in)).
    Weights kept in PyTorch (out_dim, in_dim) orientation; biases (out_dim,)."""
    def linear(key, in_dim, out, bias=True):
        kw, kb = jax.random.split(key)
        bound = 1.0 / (in_dim ** 0.5)
        w = jax.random.uniform(kw, (out, in_dim), jnp.float32, -bound, bound)
        if bias:
            b = jax.random.uniform(kb, (out,), jnp.float32, -bound, bound)
            return w, b
        return w

    keys = jax.random.split(key, 8)
    g1w, g1b = linear(keys[0], x_dim, d_dim)
    l1w = linear(keys[1], x_dim, d_dim, bias=False)
    g2w, g2b = linear(keys[2], d_dim, d_dim)
    l2w = linear(keys[3], d_dim, d_dim, bias=False)
    g3w, g3b = linear(keys[4], d_dim, d_dim)
    l3w = linear(keys[5], d_dim, d_dim, bias=False)
    r1w, r1b = linear(keys[6], d_dim, d_dim)
    r2w, r2b = linear(keys[7], d_dim, out_dim)
    return dict(g1w=g1w, g1b=g1b, l1w=l1w,
                g2w=g2w, g2b=g2b, l2w=l2w,
                g3w=g3w, g3b=g3b, l3w=l3w,
                r1w=r1w, r1b=r1b, r2w=r2w, r2b=r2b)


def dtanh_reference(x, p):
    """Pure-JAX reference of DTanh(pool='mean') eval-mode forward."""
    def pe2_mean(h, gw, gb, lw):
        hm = jnp.mean(h, axis=1, keepdims=True)
        return h @ gw.T + gb - hm @ lw.T

    h = jnp.tanh(pe2_mean(x, p["g1w"], p["g1b"], p["l1w"]))
    h = jnp.tanh(pe2_mean(h, p["g2w"], p["g2b"], p["l2w"]))
    h = jnp.tanh(pe2_mean(h, p["g3w"], p["g3b"], p["l3w"]))
    pooled = jnp.max(h, axis=1)
    r = jnp.tanh(pooled @ p["r1w"].T + p["r1b"])
    return r @ p["r2w"].T + p["r2b"]


if __name__ == "__main__":
    N, X_DIM, D_DIM = 8, 3, 32

    key = jax.random.PRNGKey(0)
    kx, kp, kx2 = jax.random.split(key, 3)
    params = init_params(kp, X_DIM, D_DIM, out_dim=40)

    # Small check (single grid step, heavy lane padding path).
    B = 2
    x = jax.random.normal(kx, (B, N, X_DIM), jnp.float32)
    out = jax.block_until_ready(dtanh_forward(x, params))
    ref = dtanh_reference(x, params)
    assert out.shape == (B, 40), out.shape
    assert jnp.allclose(out, ref, atol=3e-5, rtol=3e-5), \
        f"max abs err {jnp.max(jnp.abs(out - ref))}"

    # Multi-grid-step check (batch split into several lane-dense blocks + padding).
    B2 = 300
    x2 = jax.random.normal(kx2, (B2, N, X_DIM), jnp.float32)
    out2 = jax.block_until_ready(dtanh_forward(x2, params))
    ref2 = dtanh_reference(x2, params)
    assert out2.shape == (B2, 40), out2.shape
    assert jnp.allclose(out2, ref2, atol=3e-5, rtol=3e-5), \
        f"max abs err {jnp.max(jnp.abs(out2 - ref2))}"

    print("KERNEL_OK")
</pallas_src>

<mosaic_0001>
module attributes {stable_mosaic.version = 11 : i64} {
  func.func @dtanh_kernel(%arg0: i32, %arg1: memref<24x128xf32, #tpu.memory_space<vmem>>, %arg2: memref<256x24xf32, #tpu.memory_space<vmem>>, %arg3: memref<256x256xf32, #tpu.memory_space<vmem>>, %arg4: memref<256x256xf32, #tpu.memory_space<vmem>>, %arg5: memref<256x1xf32, #tpu.memory_space<vmem>>, %arg6: memref<256x1xf32, #tpu.memory_space<vmem>>, %arg7: memref<256x1xf32, #tpu.memory_space<vmem>>, %arg8: memref<32x32xf32, #tpu.memory_space<vmem>>, %arg9: memref<32x1xf32, #tpu.memory_space<vmem>>, %arg10: memref<40x32xf32, #tpu.memory_space<vmem>>, %arg11: memref<40x1xf32, #tpu.memory_space<vmem>>, %arg12: memref<40x128xf32, #tpu.memory_space<vmem>>) attributes {dimension_semantics = [#tpu.dimension_semantics<parallel>], iteration_bounds = array<i64: 1>, scalar_prefetch = 0 : i64, scratch_operands = 0 : i64, tpu.core_type = #tpu.core_type<tc>, window_params = [{transform_indices = @transform_0, window_bounds = array<i64: 24, 128>}, {pipeline_mode = #tpu.pipeline_mode<synchronous>, transform_indices = @transform_1, window_bounds = array<i64: 256, 24>}, {pipeline_mode = #tpu.pipeline_mode<synchronous>, transform_indices = @transform_2, window_bounds = array<i64: 256, 256>}, {pipeline_mode = #tpu.pipeline_mode<synchronous>, transform_indices = @transform_3, window_bounds = array<i64: 256, 256>}, {pipeline_mode = #tpu.pipeline_mode<synchronous>, transform_indices = @transform_4, window_bounds = array<i64: 256, 1>}, {pipeline_mode = #tpu.pipeline_mode<synchronous>, transform_indices = @transform_5, window_bounds = array<i64: 256, 1>}, {pipeline_mode = #tpu.pipeline_mode<synchronous>, transform_indices = @transform_6, window_bounds = array<i64: 256, 1>}, {pipeline_mode = #tpu.pipeline_mode<synchronous>, transform_indices = @transform_7, window_bounds = array<i64: 32, 32>}, {pipeline_mode = #tpu.pipeline_mode<synchronous>, transform_indices = @transform_8, window_bounds = array<i64: 32, 1>}, {pipeline_mode = #tpu.pipeline_mode<synchronous>, transform_indices = @transform_9, window_bounds = array<i64: 40, 32>}, {pipeline_mode = #tpu.pipeline_mode<synchronous>, transform_indices = @transform_10, window_bounds = array<i64: 40, 1>}, {transform_indices = @transform_11, window_bounds = array<i64: 40, 128>}]} {
    %c0 = arith.constant 0 : index
    %c0_0 = arith.constant 0 : index
    %0 = vector.load %arg2[%c0, %c0_0] : memref<256x24xf32, #tpu.memory_space<vmem>>, vector<256x24xf32>
    %c0_1 = arith.constant 0 : index
    %c0_2 = arith.constant 0 : index
    %1 = vector.load %arg1[%c0_1, %c0_2] : memref<24x128xf32, #tpu.memory_space<vmem>>, vector<24x128xf32>
    %cst = arith.constant dense<0.000000e+00> : vector<256x128xf32>
    %2 = tpu.matmul %0, %1, %cst {dimension_numbers = #tpu.dot_dimension_numbers<[1], [0], [0], [1], [0, 0, 1, 1], [], []>} : vector<256x24xf32>, vector<24x128xf32>, vector<256x128xf32> -> vector<256x128xf32>
    %c0_3 = arith.constant 0 : index
    %c0_4 = arith.constant 0 : index
    %3 = vector.load %arg5[%c0_3, %c0_4] : memref<256x1xf32, #tpu.memory_space<vmem>>, vector<256x1xf32>
    %4 = vector.broadcast %3 : vector<256x1xf32> to vector<256x128xf32>
    %5 = arith.addf %2, %4 : vector<256x128xf32>
    %6 = math.tanh %5 : vector<256x128xf32>
    %c0_5 = arith.constant 0 : index
    %c0_6 = arith.constant 0 : index
    %7 = vector.load %arg3[%c0_5, %c0_6] : memref<256x256xf32, #tpu.memory_space<vmem>>, vector<256x256xf32>
    %cst_7 = arith.constant dense<0.000000e+00> : vector<256x128xf32>
    %8 = tpu.matmul %7, %6, %cst_7 {dimension_numbers = #tpu.dot_dimension_numbers<[1], [0], [0], [1], [0, 0, 1, 1], [], []>} : vector<256x256xf32>, vector<256x128xf32>, vector<256x128xf32> -> vector<256x128xf32>
    %c0_8 = arith.constant 0 : index
    %c0_9 = arith.constant 0 : index
    %9 = vector.load %arg6[%c0_8, %c0_9] : memref<256x1xf32, #tpu.memory_space<vmem>>, vector<256x1xf32>
    %10 = vector.broadcast %9 : vector<256x1xf32> to vector<256x128xf32>
    %11 = arith.addf %8, %10 : vector<256x128xf32>
    %12 = math.tanh %11 : vector<256x128xf32>
    %c0_10 = arith.constant 0 : index
    %c0_11 = arith.constant 0 : index
    %13 = vector.load %arg4[%c0_10, %c0_11] : memref<256x256xf32, #tpu.memory_space<vmem>>, vector<256x256xf32>
    %cst_12 = arith.constant dense<0.000000e+00> : vector<256x128xf32>
    %14 = tpu.matmul %13, %12, %cst_12 {dimension_numbers = #tpu.dot_dimension_numbers<[1], [0], [0], [1], [0, 0, 1, 1], [], []>} : vector<256x256xf32>, vector<256x128xf32>, vector<256x128xf32> -> vector<256x128xf32>
    %c0_13 = arith.constant 0 : index
    %c0_14 = arith.constant 0 : index
    %15 = vector.load %arg7[%c0_13, %c0_14] : memref<256x1xf32, #tpu.memory_space<vmem>>, vector<256x1xf32>
    %16 = vector.broadcast %15 : vector<256x1xf32> to vector<256x128xf32>
    %17 = arith.addf %14, %16 : vector<256x128xf32>
    %18 = math.tanh %17 : vector<256x128xf32>
    %19 = vector.extract_strided_slice %18 {offsets = [0, 0], sizes = [32, 128], strides = [1, 1]} : vector<256x128xf32> to vector<32x128xf32>
    %20 = vector.extract_strided_slice %18 {offsets = [32, 0], sizes = [32, 128], strides = [1, 1]} : vector<256x128xf32> to vector<32x128xf32>
    %21 = arith.maximumf %19, %20 : vector<32x128xf32>
    %22 = vector.extract_strided_slice %18 {offsets = [64, 0], sizes = [32, 128], strides = [1, 1]} : vector<256x128xf32> to vector<32x128xf32>
    %23 = arith.maximumf %21, %22 : vector<32x128xf32>
    %24 = vector.extract_strided_slice %18 {offsets = [96, 0], sizes = [32, 128], strides = [1, 1]} : vector<256x128xf32> to vector<32x128xf32>
    %25 = arith.maximumf %23, %24 : vector<32x128xf32>
    %26 = vector.extract_strided_slice %18 {offsets = [128, 0], sizes = [32, 128], strides = [1, 1]} : vector<256x128xf32> to vector<32x128xf32>
    %27 = arith.maximumf %25, %26 : vector<32x128xf32>
    %28 = vector.extract_strided_slice %18 {offsets = [160, 0], sizes = [32, 128], strides = [1, 1]} : vector<256x128xf32> to vector<32x128xf32>
    %29 = arith.maximumf %27, %28 : vector<32x128xf32>
    %30 = vector.extract_strided_slice %18 {offsets = [192, 0], sizes = [32, 128], strides = [1, 1]} : vector<256x128xf32> to vector<32x128xf32>
    %31 = arith.maximumf %29, %30 : vector<32x128xf32>
    %32 = vector.extract_strided_slice %18 {offsets = [224, 0], sizes = [32, 128], strides = [1, 1]} : vector<256x128xf32> to vector<32x128xf32>
    %33 = arith.maximumf %31, %32 : vector<32x128xf32>
    %c0_15 = arith.constant 0 : index
    %c0_16 = arith.constant 0 : index
    %34 = vector.load %arg8[%c0_15, %c0_16] : memref<32x32xf32, #tpu.memory_space<vmem>>, vector<32x32xf32>
    %cst_17 = arith.constant dense<0.000000e+00> : vector<32x128xf32>
    %35 = tpu.matmul %34, %33, %cst_17 {dimension_numbers = #tpu.dot_dimension_numbers<[1], [0], [0], [1], [0, 0, 1, 1], [], []>} : vector<32x32xf32>, vector<32x128xf32>, vector<32x128xf32> -> vector<32x128xf32>
    %c0_18 = arith.constant 0 : index
    %c0_19 = arith.constant 0 : index
    %36 = vector.load %arg9[%c0_18, %c0_19] : memref<32x1xf32, #tpu.memory_space<vmem>>, vector<32x1xf32>
    %37 = vector.broadcast %36 : vector<32x1xf32> to vector<32x128xf32>
    %38 = arith.addf %35, %37 : vector<32x128xf32>
    %39 = math.tanh %38 : vector<32x128xf32>
    %c0_20 = arith.constant 0 : index
    %c0_21 = arith.constant 0 : index
    %40 = vector.load %arg10[%c0_20, %c0_21] : memref<40x32xf32, #tpu.memory_space<vmem>>, vector<40x32xf32>
    %cst_22 = arith.constant dense<0.000000e+00> : vector<40x128xf32>
    %41 = tpu.matmul %40, %39, %cst_22 {dimension_numbers = #tpu.dot_dimension_numbers<[1], [0], [0], [1], [0, 0, 1, 1], [], []>} : vector<40x32xf32>, vector<32x128xf32>, vector<40x128xf32> -> vector<40x128xf32>
    %c0_23 = arith.constant 0 : index
    %c0_24 = arith.constant 0 : index
    %42 = vector.load %arg11[%c0_23, %c0_24] : memref<40x1xf32, #tpu.memory_space<vmem>>, vector<40x1xf32>
    %43 = vector.broadcast %42 : vector<40x1xf32> to vector<40x128xf32>
    %44 = arith.addf %41, %43 : vector<40x128xf32>
    %c0_25 = arith.constant 0 : index
    %c0_26 = arith.constant 0 : index
    %45 = vector.load %arg12[%c0_25, %c0_26] : memref<40x128xf32, #tpu.memory_space<vmem>>, vector<40x128xf32>
    tpu.vector_store %arg12[%c0_25, %c0_26], %44 {strides = array<i32>} : memref<40x128xf32, #tpu.memory_space<vmem>>, vector<40x128xf32>,
    return
  }
  func.func @transform_0(%arg0: i32) -> (i32, i32) {
    %c0_i32 = arith.constant 0 : i32
    %c0_i32_0 = arith.constant 0 : i32
    return %c0_i32, %arg0 : i32, i32
  }
  func.func @transform_1(%arg0: i32) -> (i32, i32) {
    %c0_i32 = arith.constant 0 : i32
    %c0_i32_0 = arith.constant 0 : i32
    %c0_i32_1 = arith.constant 0 : i32
    return %c0_i32, %c0_i32_0 : i32, i32
  }
  func.func @transform_2(%arg0: i32) -> (i32, i32) {
    %c0_i32 = arith.constant 0 : i32
    %c0_i32_0 = arith.constant 0 : i32
    %c0_i32_1 = arith.constant 0 : i32
    return %c0_i32, %c0_i32_0 : i32, i32
  }
  func.func @transform_3(%arg0: i32) -> (i32, i32) {
    %c0_i32 = arith.constant 0 : i32
    %c0_i32_0 = arith.constant 0 : i32
    %c0_i32_1 = arith.constant 0 : i32
    return %c0_i32, %c0_i32_0 : i32, i32
  }
  func.func @transform_4(%arg0: i32) -> (i32, i32) {
    %c0_i32 = arith.constant 0 : i32
    %c0_i32_0 = arith.constant 0 : i32
    %c0_i32_1 = arith.constant 0 : i32
    return %c0_i32, %c0_i32_0 : i32, i32
  }
  func.func @transform_5(%arg0: i32) -> (i32, i32) {
    %c0_i32 = arith.constant 0 : i32
    %c0_i32_0 = arith.constant 0 : i32
    %c0_i32_1 = arith.constant 0 : i32
    return %c0_i32, %c0_i32_0 : i32, i32
  }
  func.func @transform_6(%arg0: i32) -> (i32, i32) {
    %c0_i32 = arith.constant 0 : i32
    %c0_i32_0 = arith.constant 0 : i32
    %c0_i32_1 = arith.constant 0 : i32
    return %c0_i32, %c0_i32_0 : i32, i32
  }
  func.func @transform_7(%arg0: i32) -> (i32, i32) {
    %c0_i32 = arith.constant 0 : i32
    %c0_i32_0 = arith.constant 0 : i32
    %c0_i32_1 = arith.constant 0 : i32
    return %c0_i32, %c0_i32_0 : i32, i32
  }
  func.func @transform_8(%arg0: i32) -> (i32, i32) {
    %c0_i32 = arith.constant 0 : i32
    %c0_i32_0 = arith.constant 0 : i32
    %c0_i32_1 = arith.constant 0 : i32
    return %c0_i32, %c0_i32_0 : i32, i32
  }
  func.func @transform_9(%arg0: i32) -> (i32, i32) {
    %c0_i32 = arith.constant 0 : i32
    %c0_i32_0 = arith.constant 0 : i32
    %c0_i32_1 = arith.constant 0 : i32
    return %c0_i32, %c0_i32_0 : i32, i32
  }
  func.func @transform_10(%arg0: i32) -> (i32, i32) {
    %c0_i32 = arith.constant 0 : i32
    %c0_i32_0 = arith.constant 0 : i32
    %c0_i32_1 = arith.constant 0 : i32
    return %c0_i32, %c0_i32_0 : i32, i32
  }
  func.func @transform_11(%arg0: i32) -> (i32, i32) {
    %c0_i32 = arith.constant 0 : i32
    %c0_i32_0 = arith.constant 0 : i32
    return %c0_i32, %arg0 : i32, i32
  }
}

</mosaic_0001>

<llo_original>
// kernel: tpu_custom_call.1
$region0: #{tpu_custom_call.1}
  #allocation0 [shape = 'u32[]', space=smem, size = 0x4, offset = 0x4, fixed_abs, tag = 'smem constant byte address 0x4 - core index']
  #allocation1 [shape = 'u32[144,128]{1,0:T(1,128)}', space=vmem, size = 0x12000, scoped, tag = 'internal scratch']
  %s0 = inlined_call_operand.vmem [shape: f32[24,128], index: 0, kind: input, shape index: {}]
  %s1 = inlined_call_operand.vmem [shape: f32[256,24], index: 1, kind: input, shape index: {}]
  %s2 = inlined_call_operand.vmem [shape: f32[256,256], index: 2, kind: input, shape index: {}]
  %s3 = inlined_call_operand.vmem [shape: f32[256,256], index: 3, kind: input, shape index: {}]
  %s4 = inlined_call_operand.vmem [shape: f32[256,1], index: 4, kind: input, shape index: {}]
  %s5 = inlined_call_operand.vmem [shape: f32[256,1], index: 5, kind: input, shape index: {}]
  %s6 = inlined_call_operand.vmem [shape: f32[256,1], index: 6, kind: input, shape index: {}]
  %s7 = inlined_call_operand.vmem [shape: f32[32,32], index: 7, kind: input, shape index: {}]
  %s8 = inlined_call_operand.vmem [shape: f32[32,1], index: 8, kind: input, shape index: {}]
  %s9 = inlined_call_operand.vmem [shape: f32[40,32], index: 9, kind: input, shape index: {}]
  %s10 = inlined_call_operand.vmem [shape: f32[40,1], index: 10, kind: input, shape index: {}]
  %s11 = inlined_call_operand.hbm [shape: f32[40,128], index: 11, kind: output, shape index: {}]
  %s12 = sld [smem:[#allocation0]]
  $region54: #{tpu_custom_call.1} parent=0
    _
  %s14 = ssub.s32 1, %s12
  %s15 = scalar_select 0, %s14, %s12
  $region1: #{tpu_custom_call.1} parent=0
    #allocation2 [shape = 'u8[20480]{0}', space=vmem, size = 0x5000, scoped, tag = 'output window, operand 0, single buffered']
    #allocation3 [shape = 's32[1]{0}', space=sflag, size = 0x4, scoped, tag = 'scoped memory for tpu_custom_call.1']
    %16 = vsyncpa [#allocation3], 0
    // Predicated region
    $region2: #{tpu_custom_call.1} parent=1 // pred_check
      _
    $region3: #{tpu_custom_call.1} parent=1 // pred_check_branch
      %18 = sbr.rel (0) target = $region5
    $region4: #{tpu_custom_call.1} parent=1 // pred_region
      _
    $region5: #{tpu_custom_call.1} parent=1 // pred_fallthru
      _
    // Predicated region
    $region6: #{tpu_custom_call.1} parent=1 // pred_check
      _
    $region7: #{tpu_custom_call.1} parent=1 // pred_check_branch
      %20 = sbr.rel (0) target = $region9
    $region8: #{tpu_custom_call.1} parent=1 // pred_region
      _
    $region9: #{tpu_custom_call.1} parent=1 // pred_fallthru
      _
    // Predicated region
    $region10: #{tpu_custom_call.1} parent=1 // pred_check
      _
    $region11: #{tpu_custom_call.1} parent=1 // pred_check_branch
      %22 = sbr.rel (0) target = $region13
    $region12: #{tpu_custom_call.1} parent=1 // pred_region
      _
    $region13: #{tpu_custom_call.1} parent=1 // pred_fallthru
      _
    // Predicated region
    $region14: #{tpu_custom_call.1} parent=1 // pred_check
      _
    $region15: #{tpu_custom_call.1} parent=1 // pred_check_branch
      %24 = sbr.rel (0) target = $region17
    $region16: #{tpu_custom_call.1} parent=1 // pred_region
      _
    $region17: #{tpu_custom_call.1} parent=1 // pred_fallthru
      _
    // Predicated region
    $region18: #{tpu_custom_call.1} parent=1 // pred_check
      _
    $region19: #{tpu_custom_call.1} parent=1 // pred_check_branch
      %26 = sbr.rel (0) target = $region21
    $region20: #{tpu_custom_call.1} parent=1 // pred_region
      _
    $region21: #{tpu_custom_call.1} parent=1 // pred_fallthru
      _
    // Predicated region
    $region22: #{tpu_custom_call.1} parent=1 // pred_check
      _
    $region23: #{tpu_custom_call.1} parent=1 // pred_check_branch
      %28 = sbr.rel (0) target = $region25
    $region24: #{tpu_custom_call.1} parent=1 // pred_region
      _
    $region25: #{tpu_custom_call.1} parent=1 // pred_fallthru
      _
    // Predicated region
    $region26: #{tpu_custom_call.1} parent=1 // pred_check
      _
    $region27: #{tpu_custom_call.1} parent=1 // pred_check_branch
      %30 = sbr.rel (0) target = $region29
    $region28: #{tpu_custom_call.1} parent=1 // pred_region
      _
    $region29: #{tpu_custom_call.1} parent=1 // pred_fallthru
      _
    // Predicated region
    $region30: #{tpu_custom_call.1} parent=1 // pred_check
      _
    $region31: #{tpu_custom_call.1} parent=1 // pred_check_branch
      %32 = sbr.rel (0) target = $region33
    $region32: #{tpu_custom_call.1} parent=1 // pred_region
      _
    $region33: #{tpu_custom_call.1} parent=1 // pred_fallthru
      _
    // Predicated region
    $region34: #{tpu_custom_call.1} parent=1 // pred_check
      _
    $region35: #{tpu_custom_call.1} parent=1 // pred_check_branch
      %34 = sbr.rel (0) target = $region37
    $region36: #{tpu_custom_call.1} parent=1 // pred_region
      _
    $region37: #{tpu_custom_call.1} parent=1 // pred_fallthru
      _
    // Predicated region
    $region38: #{tpu_custom_call.1} parent=1 // pred_check
      _
    $region39: #{tpu_custom_call.1} parent=1 // pred_check_branch
      %36 = sbr.rel (0) target = $region41
    $region40: #{tpu_custom_call.1} parent=1 // pred_region
      _
    $region41: #{tpu_custom_call.1} parent=1 // pred_fallthru
      _
    // Predicated region
    $region42: #{tpu_custom_call.1} parent=1 // pred_check
      _
    $region43: #{tpu_custom_call.1} parent=1 // pred_check_branch
      %38 = sbr.rel (0) target = $region45
    $region44: #{tpu_custom_call.1} parent=1 // pred_region
      _
    $region45: #{tpu_custom_call.1} parent=1 // pred_fallthru
      _
    %v39 = vld [vmem:[%s1] sm:$0xff]
    %v40 = vld [vmem:[%s1 + $0x8] sm:$0xff]
    %v41 = vld [vmem:[%s1 + $0x10] sm:$0xff]
    %v42 = vld [vmem:[%s1 + $0x18] sm:$0xff]
    %v43 = vld [vmem:[%s1 + $0x20] sm:$0xff]
    %v44 = vld [vmem:[%s1 + $0x28] sm:$0xff]
    %v45 = vld [vmem:[%s1 + $0x30] sm:$0xff]
    %v46 = vld [vmem:[%s1 + $0x38] sm:$0xff]
    %v47 = vld [vmem:[%s1 + $0x40] sm:$0xff]
    %v48 = vld [vmem:[%s1 + $0x48] sm:$0xff]
    %v49 = vld [vmem:[%s1 + $0x50] sm:$0xff]
    %v50 = vld [vmem:[%s1 + $0x58] sm:$0xff]
    %v51 = vld [vmem:[%s1 + $0x60] sm:$0xff]
    %v52 = vld [vmem:[%s1 + $0x68] sm:$0xff]
    %v53 = vld [vmem:[%s1 + $0x70] sm:$0xff]
    %v54 = vld [vmem:[%s1 + $0x78] sm:$0xff]
    %v55 = vld [vmem:[%s1 + $0x80] sm:$0xff]
    %v56 = vld [vmem:[%s1 + $0x88] sm:$0xff]
    %v57 = vld [vmem:[%s1 + $0x90] sm:$0xff]
    %v58 = vld [vmem:[%s1 + $0x98] sm:$0xff]
    %v59 = vld [vmem:[%s1 + $0xa0] sm:$0xff]
    %v60 = vld [vmem:[%s1 + $0xa8] sm:$0xff]
    %v61 = vld [vmem:[%s1 + $0xb0] sm:$0xff]
    %v62 = vld [vmem:[%s1 + $0xb8] sm:$0xff]
    %v63 = vld [vmem:[%s1 + $0xc0] sm:$0xff]
    %v64 = vld [vmem:[%s1 + $0xc8] sm:$0xff]
    %v65 = vld [vmem:[%s1 + $0xd0] sm:$0xff]
    %v66 = vld [vmem:[%s1 + $0xd8] sm:$0xff]
    %v67 = vld [vmem:[%s1 + $0xe0] sm:$0xff]
    %v68 = vld [vmem:[%s1 + $0xe8] sm:$0xff]
    %v69 = vld [vmem:[%s1 + $0xf0] sm:$0xff]
    %v70 = vld [vmem:[%s1 + $0xf8] sm:$0xff]
    %v71 = vld [vmem:[%s0] sm:$0xff]
    %v72 = vld [vmem:[%s0 + $0x8] sm:$0xff]
    %v73 = vld [vmem:[%s0 + $0x10] sm:$0xff]
    %v74 = vld [vmem:[%s4] sm:$0xff]
    %v75 = vld [vmem:[%s4 + $0x8] sm:$0xff]
    %v76 = vld [vmem:[%s4 + $0x10] sm:$0xff]
    %v77 = vld [vmem:[%s4 + $0x18] sm:$0xff]
    %v78 = vld [vmem:[%s4 + $0x20] sm:$0xff]
    %v79 = vld [vmem:[%s4 + $0x28] sm:$0xff]
    %v80 = vld [vmem:[%s4 + $0x30] sm:$0xff]
    %v81 = vld [vmem:[%s4 + $0x38] sm:$0xff]
    %v82 = vld [vmem:[%s4 + $0x40] sm:$0xff]
    %v83 = vld [vmem:[%s4 + $0x48] sm:$0xff]
    %v84 = vld [vmem:[%s4 + $0x50] sm:$0xff]
    %v85 = vld [vmem:[%s4 + $0x58] sm:$0xff]
    %v86 = vld [vmem:[%s4 + $0x60] sm:$0xff]
    %v87 = vld [vmem:[%s4 + $0x68] sm:$0xff]
    %v88 = vld [vmem:[%s4 + $0x70] sm:$0xff]
    %v89 = vld [vmem:[%s4 + $0x78] sm:$0xff]
    %v90 = vld [vmem:[%s4 + $0x80] sm:$0xff]
    %v91 = vld [vmem:[%s4 + $0x88] sm:$0xff]
    %v92 = vld [vmem:[%s4 + $0x90] sm:$0xff]
    %v93 = vld [vmem:[%s4 + $0x98] sm:$0xff]
    %v94 = vld [vmem:[%s4 + $0xa0] sm:$0xff]
    %v95 = vld [vmem:[%s4 + $0xa8] sm:$0xff]
    %v96 = vld [vmem:[%s4 + $0xb0] sm:$0xff]
    %v97 = vld [vmem:[%s4 + $0xb8] sm:$0xff]
    %v98 = vld [vmem:[%s4 + $0xc0] sm:$0xff]
    %v99 = vld [vmem:[%s4 + $0xc8] sm:$0xff]
    %v100 = vld [vmem:[%s4 + $0xd0] sm:$0xff]
    %v101 = vld [vmem:[%s4 + $0xd8] sm:$0xff]
    %v102 = vld [vmem:[%s4 + $0xe0] sm:$0xff]
    %v103 = vld [vmem:[%s4 + $0xe8] sm:$0xff]
    %v104 = vld [vmem:[%s4 + $0xf0] sm:$0xff]
    %v105 = vld [vmem:[%s4 + $0xf8] sm:$0xff]
    %107 = vset.pattern.permute.xlu0 0
    %108 = vperm.xlu0 %107, %v74
    %v109 = vpop.permute.xlu0 %108
    %112 = vset.pattern.permute.xlu0 0
    %113 = vperm.xlu0 %112, %v75
    %v114 = vpop.permute.xlu0 %113
    %117 = vset.pattern.permute.xlu0 0
    %118 = vperm.xlu0 %117, %v76
    %v119 = vpop.permute.xlu0 %118
    %122 = vset.pattern.permute.xlu0 0
    %123 = vperm.xlu0 %122, %v77
    %v124 = vpop.permute.xlu0 %123
    %127 = vset.pattern.permute.xlu0 0
    %128 = vperm.xlu0 %127, %v78
    %v129 = vpop.permute.xlu0 %128
    %132 = vset.pattern.permute.xlu0 0
    %133 = vperm.xlu0 %132, %v79
    %v134 = vpop.permute.xlu0 %133
    %137 = vset.pattern.permute.xlu0 0
    %138 = vperm.xlu0 %137, %v80
    %v139 = vpop.permute.xlu0 %138
    %142 = vset.pattern.permute.xlu0 0
    %143 = vperm.xlu0 %142, %v81
    %v144 = vpop.permute.xlu0 %143
    %147 = vset.pattern.permute.xlu0 0
    %148 = vperm.xlu0 %147, %v82
    %v149 = vpop.permute.xlu0 %148
    %152 = vset.pattern.permute.xlu0 0
    %153 = vperm.xlu0 %152, %v83
    %v154 = vpop.permute.xlu0 %153
    %157 = vset.pattern.permute.xlu0 0
    %158 = vperm.xlu0 %157, %v84
    %v159 = vpop.permute.xlu0 %158
    %162 = vset.pattern.permute.xlu0 0
    %163 = vperm.xlu0 %162, %v85
    %v164 = vpop.permute.xlu0 %163
    %167 = vset.pattern.permute.xlu0 0
    %168 = vperm.xlu0 %167, %v86
    %v169 = vpop.permute.xlu0 %168
    %172 = vset.pattern.permute.xlu0 0
    %173 = vperm.xlu0 %172, %v87
    %v174 = vpop.permute.xlu0 %173
    %177 = vset.pattern.permute.xlu0 0
    %178 = vperm.xlu0 %177, %v88
    %v179 = vpop.permute.xlu0 %178
    %182 = vset.pattern.permute.xlu0 0
    %183 = vperm.xlu0 %182, %v89
    %v184 = vpop.permute.xlu0 %183
    %187 = vset.pattern.permute.xlu0 0
    %188 = vperm.xlu0 %187, %v90
    %v189 = vpop.permute.xlu0 %188
    %192 = vset.pattern.permute.xlu0 0
    %193 = vperm.xlu0 %192, %v91
    %v194 = vpop.permute.xlu0 %193
    %197 = vset.pattern.permute.xlu0 0
    %198 = vperm.xlu0 %197, %v92
    %v199 = vpop.permute.xlu0 %198
    %202 = vset.pattern.permute.xlu0 0
    %203 = vperm.xlu0 %202, %v93
    %v204 = vpop.permute.xlu0 %203
    %207 = vset.pattern.permute.xlu0 0
    %208 = vperm.xlu0 %207, %v94
    %v209 = vpop.permute.xlu0 %208
    %212 = vset.pattern.permute.xlu0 0
    %213 = vperm.xlu0 %212, %v95
    %v214 = vpop.permute.xlu0 %213
    %217 = vset.pattern.permute.xlu0 0
    %218 = vperm.xlu0 %217, %v96
    %v219 = vpop.permute.xlu0 %218
    %222 = vset.pattern.permute.xlu0 0
    %223 = vperm.xlu0 %222, %v97
    %v224 = vpop.permute.xlu0 %223
    %227 = vset.pattern.permute.xlu0 0
    %228 = vperm.xlu0 %227, %v98
    %v229 = vpop.permute.xlu0 %228
    %232 = vset.pattern.permute.xlu0 0
    %233 = vperm.xlu0 %232, %v99
    %v234 = vpop.permute.xlu0 %233
    %237 = vset.pattern.permute.xlu0 0
    %238 = vperm.xlu0 %237, %v100
    %v239 = vpop.permute.xlu0 %238
    %242 = vset.pattern.permute.xlu0 0
    %243 = vperm.xlu0 %242, %v101
    %v244 = vpop.permute.xlu0 %243
    %247 = vset.pattern.permute.xlu0 0
    %248 = vperm.xlu0 %247, %v102
    %v249 = vpop.permute.xlu0 %248
    %252 = vset.pattern.permute.xlu0 0
    %253 = vperm.xlu0 %252, %v103
    %v254 = vpop.permute.xlu0 %253
    %257 = vset.pattern.permute.xlu0 0
    %258 = vperm.xlu0 %257, %v104
    %v259 = vpop.permute.xlu0 %258
    %262 = vset.pattern.permute.xlu0 0
    %263 = vperm.xlu0 %262, %v105
    %v264 = vpop.permute.xlu0 %263
    %vm266 = vcmask 195584
    %v268 = vsel %vm266, %v39, 0
    %v271 = vsel %vm266, %v40, 0
    %v274 = vsel %vm266, %v41, 0
    %v277 = vsel %vm266, %v42, 0
    %v280 = vsel %vm266, %v43, 0
    %v283 = vsel %vm266, %v44, 0
    %v286 = vsel %vm266, %v45, 0
    %v289 = vsel %vm266, %v46, 0
    %v292 = vsel %vm266, %v47, 0
    %v295 = vsel %vm266, %v48, 0
    %v298 = vsel %vm266, %v49, 0
    %v301 = vsel %vm266, %v50, 0
    %v304 = vsel %vm266, %v51, 0
    %v307 = vsel %vm266, %v52, 0
    %v310 = vsel %vm266, %v53, 0
    %v313 = vsel %vm266, %v54, 0
    %v316 = vsel %vm266, %v55, 0
    %v319 = vsel %vm266, %v56, 0
    %v322 = vsel %vm266, %v57, 0
    %v325 = vsel %vm266, %v58, 0
    %v328 = vsel %vm266, %v59, 0
    %v331 = vsel %vm266, %v60, 0
    %v334 = vsel %vm266, %v61, 0
    %v337 = vsel %vm266, %v62, 0
    %v340 = vsel %vm266, %v63, 0
    %v343 = vsel %vm266, %v64, 0
    %v346 = vsel %vm266, %v65, 0
    %v349 = vsel %vm266, %v66, 0
    %v352 = vsel %vm266, %v67, 0
    %v355 = vsel %vm266, %v68, 0
    %v358 = vsel %vm266, %v69, 0
    %v361 = vsel %vm266, %v70, 0
    %363 = vmatprep.subr.mxu0 0.0
    %364 = vmatpush1.msra.mxu0 %v71
    %365 = vmatprep.subr.mxu0 0.0
    %366 = vmatpush1.msra.mxu0 %v72
    %367 = vmatprep.subr.mxu0 0.0
    %368 = vmatpush1.msra.mxu0 %v73
    %369 = vmatprep.subr.mxu0 0.0
    %370 = vmatpush1.msra.mxu0 0.0
    %371 = vmatprep.subr.mxu0 0.0
    %372 = vmatpush1.msra.mxu0 0.0
    %373 = vmatprep.subr.mxu0 0.0
    %374 = vmatpush1.msra.mxu0 0.0
    %375 = vmatprep.subr.mxu0 0.0
    %376 = vmatpush1.msra.mxu0 0.0
    %377 = vmatprep.subr.mxu0 0.0
    %378 = vmatpush1.msra.mxu0 0.0
    %379 = vmatprep.subr.mxu0 0.0
    %380 = vmatpush1.msra.mxu0 0.0
    %381 = vmatprep.subr.mxu0 0.0
    %382 = vmatpush1.msra.mxu0 0.0
    %383 = vmatprep.subr.mxu0 0.0
    %384 = vmatpush1.msra.mxu0 0.0
    %385 = vmatprep.subr.mxu0 0.0
    %386 = vmatpush1.msra.mxu0 0.0
    %387 = vmatprep.subr.mxu0 0.0
    %388 = vmatpush1.msra.mxu0 0.0
    %389 = vmatprep.subr.mxu0 0.0
    %390 = vmatpush1.msra.mxu0 0.0
    %391 = vmatprep.subr.mxu0 0.0
    %392 = vmatpush1.msra.mxu0 0.0
    %393 = vmatprep.subr.mxu0 0.0
    %394 = vmatpush1.msra.mxu0 0.0
    %395 = vmatprep.subr.mxu0 0.0
    %396 = vmatpush1.msra.mxu0 0.0
    %397 = vmatprep.subr.mxu0 0.0
    %398 = vmatpush1.msra.mxu0 0.0
    %399 = vmatprep.subr.mxu0 0.0
    %400 = vmatpush1.msra.mxu0 0.0
    %401 = vmatprep.subr.mxu0 0.0
    %402 = vmatpush1.msra.mxu0 0.0
    %403 = vmatprep.subr.mxu0 0.0
    %404 = vmatpush1.msra.mxu0 0.0
    %405 = vmatprep.subr.mxu0 0.0
    %406 = vmatpush1.msra.mxu0 0.0
    %407 = vmatprep.subr.mxu0 0.0
    %408 = vmatpush1.msra.mxu0 0.0
    %409 = vmatprep.subr.mxu0 0.0
    %410 = vmatpush1.msra.mxu0 0.0
    %411 = vmatprep.subr.mxu0 0.0
    %412 = vmatpush1.msra.mxu0 0.0
    %413 = vmatprep.subr.mxu0 0.0
    %414 = vmatpush1.msra.mxu0 0.0
    %415 = vmatprep.subr.mxu0 0.0
    %416 = vmatpush1.msra.mxu0 0.0
    %417 = vmatprep.subr.mxu0 0.0
    %418 = vmatpush1.msra.mxu0 0.0
    %419 = vmatprep.subr.mxu0 0.0
    %420 = vmatpush1.msra.mxu0 0.0
    %421 = vmatprep.subr.mxu0 0.0
    %422 = vmatpush1.msra.mxu0 0.0
    %423 = vmatprep.subr.mxu0 0.0
    %424 = vmatpush1.msra.mxu0 0.0
    %425 = vmatprep.subr.mxu0 0.0
    %426 = vmatpush1.msra.mxu0 0.0
    %427 = vmatprep.mubr.f32.mxu0 0.0
    %428 = vmatmul.mubr.f32.gmra.mrb[0].mxu0 %v268
    %v429 = vpop.f32.mrb[0].mxu0
    %v430 = vadd.f32 %v109, %v429
    %v431 = vpop.f32.mrb[0].mxu0
    %432 = vmatprep.mubr.f32.mxu0 0.0
    %433 = vmatmul.mubr.f32.gmra.mrb[0].mxu0 %v271
    %v434 = vpop.f32.mrb[0].mxu0
    %v435 = vadd.f32 %v114, %v434
    %v436 = vpop.f32.mrb[0].mxu0
    %437 = vmatprep.mubr.f32.mxu0 0.0
    %438 = vmatmul.mubr.f32.gmra.mrb[0].mxu0 %v274
    %v439 = vpop.f32.mrb[0].mxu0
    %v440 = vadd.f32 %v119, %v439
    %v441 = vpop.f32.mrb[0].mxu0
    %442 = vmatprep.mubr.f32.mxu0 0.0
    %443 = vmatmul.mubr.f32.gmra.mrb[0].mxu0 %v277
    %v444 = vpop.f32.mrb[0].mxu0
    %v445 = vadd.f32 %v124, %v444
    %v446 = vpop.f32.mrb[0].mxu0
    %447 = vmatprep.mubr.f32.mxu0 0.0
    %448 = vmatmul.mubr.f32.gmra.mrb[0].mxu0 %v280
    %v449 = vpop.f32.mrb[0].mxu0
    %v450 = vadd.f32 %v129, %v449
    %v451 = vpop.f32.mrb[0].mxu0
    %452 = vmatprep.mubr.f32.mxu0 0.0
    %453 = vmatmul.mubr.f32.gmra.mrb[0].mxu0 %v283
    %v454 = vpop.f32.mrb[0].mxu0
    %v455 = vadd.f32 %v134, %v454
    %v456 = vpop.f32.mrb[0].mxu0
    %457 = vmatprep.mubr.f32.mxu0 0.0
    %458 = vmatmul.mubr.f32.gmra.mrb[0].mxu0 %v286
    %v459 = vpop.f32.mrb[0].mxu0
    %v460 = vadd.f32 %v139, %v459
    %v461 = vpop.f32.mrb[0].mxu0
    %462 = vmatprep.mubr.f32.mxu0 0.0
    %463 = vmatmul.mubr.f32.gmra.mrb[0].mxu0 %v289
    %v464 = vpop.f32.mrb[0].mxu0
    %v465 = vadd.f32 %v144, %v464
    %v466 = vpop.f32.mrb[0].mxu0
    %467 = vmatprep.mubr.f32.mxu0 0.0
    %468 = vmatmul.mubr.f32.gmra.mrb[0].mxu0 %v292
    %v469 = vpop.f32.mrb[0].mxu0
    %v470 = vadd.f32 %v149, %v469
    %v471 = vpop.f32.mrb[0].mxu0
    %472 = vmatprep.mubr.f32.mxu0 0.0
    %473 = vmatmul.mubr.f32.gmra.mrb[0].mxu0 %v295
    %v474 = vpop.f32.mrb[0].mxu0
    %v475 = vadd.f32 %v154, %v474
    %v476 = vpop.f32.mrb[0].mxu0
    %477 = vmatprep.mubr.f32.mxu0 0.0
    %478 = vmatmul.mubr.f32.gmra.mrb[0].mxu0 %v298
    %v479 = vpop.f32.mrb[0].mxu0
    %v480 = vadd.f32 %v159, %v479
    %v481 = vpop.f32.mrb[0].mxu0
    %482 = vmatprep.mubr.f32.mxu0 0.0
    %483 = vmatmul.mubr.f32.gmra.mrb[0].mxu0 %v301
    %v484 = vpop.f32.mrb[0].mxu0
    %v485 = vadd.f32 %v164, %v484
    %v486 = vpop.f32.mrb[0].mxu0
    %487 = vmatprep.mubr.f32.mxu0 0.0
    %488 = vmatmul.mubr.f32.gmra.mrb[0].mxu0 %v304
    %v489 = vpop.f32.mrb[0].mxu0
    %v490 = vadd.f32 %v169, %v489
    %v491 = vpop.f32.mrb[0].mxu0
    %492 = vmatprep.mubr.f32.mxu0 0.0
    %493 = vmatmul.mubr.f32.gmra.mrb[0].mxu0 %v307
    %v494 = vpop.f32.mrb[0].mxu0
    %v495 = vadd.f32 %v174, %v494
    %v496 = vpop.f32.mrb[0].mxu0
    %497 = vmatprep.mubr.f32.mxu0 0.0
    %498 = vmatmul.mubr.f32.gmra.mrb[0].mxu0 %v310
    %v499 = vpop.f32.mrb[0].mxu0
    %v500 = vadd.f32 %v179, %v499
    %v501 = vpop.f32.mrb[0].mxu0
    %502 = vmatprep.mubr.f32.mxu0 0.0
    %503 = vmatmul.mubr.f32.gmra.mrb[0].mxu0 %v313
    %v504 = vpop.f32.mrb[0].mxu0
    %v505 = vadd.f32 %v184, %v504
    %v506 = vpop.f32.mrb[0].mxu0
    %507 = vmatprep.mubr.f32.mxu0 0.0
    %508 = vmatmul.mubr.f32.gmra.mrb[0].mxu0 %v316
    %v509 = vpop.f32.mrb[0].mxu0
    %v510 = vadd.f32 %v189, %v509
    %v511 = vpop.f32.mrb[0].mxu0
    %512 = vmatprep.mubr.f32.mxu0 0.0
    %513 = vmatmul.mubr.f32.gmra.mrb[0].mxu0 %v319
    %v514 = vpop.f32.mrb[0].mxu0
    %v515 = vadd.f32 %v194, %v514
    %v516 = vpop.f32.mrb[0].mxu0
    %517 = vmatprep.mubr.f32.mxu0 0.0
    %518 = vmatmul.mubr.f32.gmra.mrb[0].mxu0 %v322
    %v519 = vpop.f32.mrb[0].mxu0
    %v520 = vadd.f32 %v199, %v519
    %v521 = vpop.f32.mrb[0].mxu0
    %522 = vmatprep.mubr.f32.mxu0 0.0
    %523 = vmatmul.mubr.f32.gmra.mrb[0].mxu0 %v325
    %v524 = vpop.f32.mrb[0].mxu0
    %v525 = vadd.f32 %v204, %v524
    %v526 = vpop.f32.mrb[0].mxu0
    %527 = vmatprep.mubr.f32.mxu0 0.0
    %528 = vmatmul.mubr.f32.gmra.mrb[0].mxu0 %v328
    %v529 = vpop.f32.mrb[0].mxu0
    %v530 = vadd.f32 %v209, %v529
    %v531 = vpop.f32.mrb[0].mxu0
    %532 = vmatprep.mubr.f32.mxu0 0.0
    %533 = vmatmul.mubr.f32.gmra.mrb[0].mxu0 %v331
    %v534 = vpop.f32.mrb[0].mxu0
    %v535 = vadd.f32 %v214, %v534
    %v536 = vpop.f32.mrb[0].mxu0
    %537 = vmatprep.mubr.f32.mxu0 0.0
    %538 = vmatmul.mubr.f32.gmra.mrb[0].mxu0 %v334
    %v539 = vpop.f32.mrb[0].mxu0
    %v540 = vadd.f32 %v219, %v539
    %v541 = vpop.f32.mrb[0].mxu0
    %542 = vmatprep.mubr.f32.mxu0 0.0
    %543 = vmatmul.mubr.f32.gmra.mrb[0].mxu0 %v337
    %v544 = vpop.f32.mrb[0].mxu0
    %v545 = vadd.f32 %v224, %v544
    %v546 = vpop.f32.mrb[0].mxu0
    %547 = vmatprep.mubr.f32.mxu0 0.0
    %548 = vmatmul.mubr.f32.gmra.mrb[0].mxu0 %v340
    %v549 = vpop.f32.mrb[0].mxu0
    %v550 = vadd.f32 %v229, %v549
    %v551 = vpop.f32.mrb[0].mxu0
    %552 = vmatprep.mubr.f32.mxu0 0.0
    %553 = vmatmul.mubr.f32.gmra.mrb[0].mxu0 %v343
    %v554 = vpop.f32.mrb[0].mxu0
    %v555 = vadd.f32 %v234, %v554
    %v556 = vpop.f32.mrb[0].mxu0
    %557 = vmatprep.mubr.f32.mxu0 0.0
    %558 = vmatmul.mubr.f32.gmra.mrb[0].mxu0 %v346
    %v559 = vpop.f32.mrb[0].mxu0
    %v560 = vadd.f32 %v239, %v559
    %v561 = vpop.f32.mrb[0].mxu0
    %562 = vmatprep.mubr.f32.mxu0 0.0
    %563 = vmatmul.mubr.f32.gmra.mrb[0].mxu0 %v349
    %v564 = vpop.f32.mrb[0].mxu0
    %v565 = vadd.f32 %v244, %v564
    %v566 = vpop.f32.mrb[0].mxu0
    %567 = vmatprep.mubr.f32.mxu0 0.0
    %568 = vmatmul.mubr.f32.gmra.mrb[0].mxu0 %v352
    %v569 = vpop.f32.mrb[0].mxu0
    %v570 = vadd.f32 %v249, %v569
    %v571 = vpop.f32.mrb[0].mxu0
    %572 = vmatprep.mubr.f32.mxu0 0.0
    %573 = vmatmul.mubr.f32.gmra.mrb[0].mxu0 %v355
    %v574 = vpop.f32.mrb[0].mxu0
    %v575 = vadd.f32 %v254, %v574
    %v576 = vpop.f32.mrb[0].mxu0
    %577 = vmatprep.mubr.f32.mxu0 0.0
    %578 = vmatmul.mubr.f32.gmra.mrb[0].mxu0 %v358
    %v579 = vpop.f32.mrb[0].mxu0
    %v580 = vadd.f32 %v259, %v579
    %v581 = vpop.f32.mrb[0].mxu0
    %582 = vmatprep.mubr.f32.mxu0 0.0
    %583 = vmatmul.mubr.f32.gmra.mrb[0].mxu0 %v361
    %v584 = vpop.f32.mrb[0].mxu0
    %v585 = vadd.f32 %v264, %v584
    %v586 = vpop.f32.mrb[0].mxu0
    %587 = vdwg.mxu0
    %v588 = vtanh.pop %v430
    %v589 = vtanh.pop %v435
    %v590 = vtanh.pop %v440
    %v591 = vtanh.pop %v445
    %v592 = vtanh.pop %v450
    %v593 = vtanh.pop %v455
    %v594 = vtanh.pop %v460
    %v595 = vtanh.pop %v465
    %v596 = vtanh.pop %v470
    %v597 = vtanh.pop %v475
    %v598 = vtanh.pop %v480
    %v599 = vtanh.pop %v485
    %v600 = vtanh.pop %v490
    %v601 = vtanh.pop %v495
    %v602 = vtanh.pop %v500
    %v603 = vtanh.pop %v505
    %v604 = vtanh.pop %v510
    %v605 = vtanh.pop %v515
    %v606 = vtanh.pop %v520
    %v607 = vtanh.pop %v525
    %v608 = vtanh.pop %v530
    %v609 = vtanh.pop %v535
    %v610 = vtanh.pop %v540
    %v611 = vtanh.pop %v545
    %v612 = vtanh.pop %v550
    %v613 = vtanh.pop %v555
    %v614 = vtanh.pop %v560
    %v615 = vtanh.pop %v565
    %v616 = vtanh.pop %v570
    %v617 = vtanh.pop %v575
    %v618 = vtanh.pop %v580
    %v619 = vtanh.pop %v585
    %v620 = vld [vmem:[%s2] sm:$0xff]
    %v621 = vld [vmem:[%s2 + $0x8] sm:$0xff]
    %v622 = vld [vmem:[%s2 + $0x10] sm:$0xff]
    %v623 = vld [vmem:[%s2 + $0x18] sm:$0xff]
    %v624 = vld [vmem:[%s2 + $0x20] sm:$0xff]
    %v625 = vld [vmem:[%s2 + $0x28] sm:$0xff]
    %v626 = vld [vmem:[%s2 + $0x30] sm:$0xff]
    %v627 = vld [vmem:[%s2 + $0x38] sm:$0xff]
    %v628 = vld [vmem:[%s2 + $0x40] sm:$0xff]
    %v629 = vld [vmem:[%s2 + $0x48] sm:$0xff]
    %v630 = vld [vmem:[%s2 + $0x50] sm:$0xff]
    %v631 = vld [vmem:[%s2 + $0x58] sm:$0xff]
    %v632 = vld [vmem:[%s2 + $0x60] sm:$0xff]
    %v633 = vld [vmem:[%s2 + $0x68] sm:$0xff]
    %v634 = vld [vmem:[%s2 + $0x70] sm:$0xff]
    %v635 = vld [vmem:[%s2 + $0x78] sm:$0xff]
    %v636 = vld [vmem:[%s2 + $0x80] sm:$0xff]
    %v637 = vld [vmem:[%s2 + $0x88] sm:$0xff]
    %v638 = vld [vmem:[%s2 + $0x90] sm:$0xff]
    %v639 = vld [vmem:[%s2 + $0x98] sm:$0xff]
    %v640 = vld [vmem:[%s2 + $0xa0] sm:$0xff]
    %v641 = vld [vmem:[%s2 + $0xa8] sm:$0xff]
    %v642 = vld [vmem:[%s2 + $0xb0] sm:$0xff]
    %v643 = vld [vmem:[%s2 + $0xb8] sm:$0xff]
    %v644 = vld [vmem:[%s2 + $0xc0] sm:$0xff]
    %v645 = vld [vmem:[%s2 + $0xc8] sm:$0xff]
    %v646 = vld [vmem:[%s2 + $0xd0] sm:$0xff]
    %v647 = vld [vmem:[%s2 + $0xd8] sm:$0xff]
    %v648 = vld [vmem:[%s2 + $0xe0] sm:$0xff]
    %v649 = vld [vmem:[%s2 + $0xe8] sm:$0xff]
    %v650 = vld [vmem:[%s2 + $0xf0] sm:$0xff]
    %v651 = vld [vmem:[%s2 + $0xf8] sm:$0xff]
    %v652 = vld [vmem:[%s2 + $0x100] sm:$0xff]
    %v653 = vld [vmem:[%s2 + $0x108] sm:$0xff]
    %v654 = vld [vmem:[%s2 + $0x110] sm:$0xff]
    %v655 = vld [vmem:[%s2 + $0x118] sm:$0xff]
    %v656 = vld [vmem:[%s2 + $0x120] sm:$0xff]
    %v657 = vld [vmem:[%s2 + $0x128] sm:$0xff]
    %v658 = vld [vmem:[%s2 + $0x130] sm:$0xff]
    %v659 = vld [vmem:[%s2 + $0x138] sm:$0xff]
    %v660 = vld [vmem:[%s2 + $0x140] sm:$0xff]
    %v661 = vld [vmem:[%s2 + $0x148] sm:$0xff]
    %v662 = vld [vmem:[%s2 + $0x150] sm:$0xff]
    %v663 = vld [vmem:[%s2 + $0x158] sm:$0xff]
    %v664 = vld [vmem:[%s2 + $0x160] sm:$0xff]
    %v665 = vld [vmem:[%s2 + $0x168] sm:$0xff]
    %v666 = vld [vmem:[%s2 + $0x170] sm:$0xff]
    %v667 = vld [vmem:[%s2 + $0x178] sm:$0xff]
    %v668 = vld [vmem:[%s2 + $0x180] sm:$0xff]
    %v669 = vld [vmem:[%s2 + $0x188] sm:$0xff]
    %v670 = vld [vmem:[%s2 + $0x190] sm:$0xff]
    %v671 = vld [vmem:[%s2 + $0x198] sm:$0xff]
    %v672 = vld [vmem:[%s2 + $0x1a0] sm:$0xff]
    %v673 = vld [vmem:[%s2 + $0x1a8] sm:$0xff]
    %v674 = vld [vmem:[%s2 + $0x1b0] sm:$0xff]
    %v675 = vld [vmem:[%s2 + $0x1b8] sm:$0xff]
    %v676 = vld [vmem:[%s2 + $0x1c0] sm:$0xff]
    %v677 = vld [vmem:[%s2 + $0x1c8] sm:$0xff]
    %v678 = vld [vmem:[%s2 + $0x1d0] sm:$0xff]
    %v679 = vld [vmem:[%s2 + $0x1d8] sm:$0xff]
    %v680 = vld [vmem:[%s2 + $0x1e0] sm:$0xff]
    %v681 = vld [vmem:[%s2 + $0x1e8] sm:$0xff]
    %v682 = vld [vmem:[%s2 + $0x1f0] sm:$0xff]
    %v683 = vld [vmem:[%s2 + $0x1f8] sm:$0xff]
    %v684 = vld [vmem:[%s5] sm:$0xff]
    %v685 = vld [vmem:[%s5 + $0x8] sm:$0xff]
    %v686 = vld [vmem:[%s5 + $0x10] sm:$0xff]
    %v687 = vld [vmem:[%s5 + $0x18] sm:$0xff]
    %v688 = vld [vmem:[%s5 + $0x20] sm:$0xff]
    %v689 = vld [vmem:[%s5 + $0x28] sm:$0xff]
    %v690 = vld [vmem:[%s5 + $0x30] sm:$0xff]
    %v691 = vld [vmem:[%s5 + $0x38] sm:$0xff]
    %v692 = vld [vmem:[%s5 + $0x40] sm:$0xff]
    %v693 = vld [vmem:[%s5 + $0x48] sm:$0xff]
    %v694 = vld [vmem:[%s5 + $0x50] sm:$0xff]
    %v695 = vld [vmem:[%s5 + $0x58] sm:$0xff]
    %v696 = vld [vmem:[%s5 + $0x60] sm:$0xff]
    %v697 = vld [vmem:[%s5 + $0x68] sm:$0xff]
    %v698 = vld [vmem:[%s5 + $0x70] sm:$0xff]
    %v699 = vld [vmem:[%s5 + $0x78] sm:$0xff]
    %v700 = vld [vmem:[%s5 + $0x80] sm:$0xff]
    %v701 = vld [vmem:[%s5 + $0x88] sm:$0xff]
    %v702 = vld [vmem:[%s5 + $0x90] sm:$0xff]
    %v703 = vld [vmem:[%s5 + $0x98] sm:$0xff]
    %v704 = vld [vmem:[%s5 + $0xa0] sm:$0xff]
    %v705 = vld [vmem:[%s5 + $0xa8] sm:$0xff]
    %v706 = vld [vmem:[%s5 + $0xb0] sm:$0xff]
    %v707 = vld [vmem:[%s5 + $0xb8] sm:$0xff]
    %v708 = vld [vmem:[%s5 + $0xc0] sm:$0xff]
    %v709 = vld [vmem:[%s5 + $0xc8] sm:$0xff]
    %v710 = vld [vmem:[%s5 + $0xd0] sm:$0xff]
    %v711 = vld [vmem:[%s5 + $0xd8] sm:$0xff]
    %v712 = vld [vmem:[%s5 + $0xe0] sm:$0xff]
    %v713 = vld [vmem:[%s5 + $0xe8] sm:$0xff]
    %v714 = vld [vmem:[%s5 + $0xf0] sm:$0xff]
    %v715 = vld [vmem:[%s5 + $0xf8] sm:$0xff]
    %717 = vset.pattern.permute.xlu0 0
    %718 = vperm.xlu0 %717, %v684
    %v719 = vpop.permute.xlu0 %718
    %722 = vset.pattern.permute.xlu0 0
    %723 = vperm.xlu0 %722, %v685
    %v724 = vpop.permute.xlu0 %723
    %727 = vset.pattern.permute.xlu0 0
    %728 = vperm.xlu0 %727, %v686
    %v729 = vpop.permute.xlu0 %728
    %732 = vset.pattern.permute.xlu0 0
    %733 = vperm.xlu0 %732, %v687
    %v734 = vpop.permute.xlu0 %733
    %737 = vset.pattern.permute.xlu0 0
    %738 = vperm.xlu0 %737, %v688
    %v739 = vpop.permute.xlu0 %738
    %742 = vset.pattern.permute.xlu0 0
    %743 = vperm.xlu0 %742, %v689
    %v744 = vpop.permute.xlu0 %743
    %747 = vset.pattern.permute.xlu0 0
    %748 = vperm.xlu0 %747, %v690
    %v749 = vpop.permute.xlu0 %748
    %752 = vset.pattern.permute.xlu0 0
    %753 = vperm.xlu0 %752, %v691
    %v754 = vpop.permute.xlu0 %753
    %757 = vset.pattern.permute.xlu0 0
    %758 = vperm.xlu0 %757, %v692
    %v759 = vpop.permute.xlu0 %758
    %762 = vset.pattern.permute.xlu0 0
    %763 = vperm.xlu0 %762, %v693
    %v764 = vpop.permute.xlu0 %763
    %767 = vset.pattern.permute.xlu0 0
    %768 = vperm.xlu0 %767, %v694
    %v769 = vpop.permute.xlu0 %768
    %772 = vset.pattern.permute.xlu0 0
    %773 = vperm.xlu0 %772, %v695
    %v774 = vpop.permute.xlu0 %773
    %777 = vset.pattern.permute.xlu0 0
    %778 = vperm.xlu0 %777, %v696
    %v779 = vpop.permute.xlu0 %778
    %782 = vset.pattern.permute.xlu0 0
    %783 = vperm.xlu0 %782, %v697
    %v784 = vpop.permute.xlu0 %783
    %787 = vset.pattern.permute.xlu0 0
    %788 = vperm.xlu0 %787, %v698
    %v789 = vpop.permute.xlu0 %788
    %792 = vset.pattern.permute.xlu0 0
    %793 = vperm.xlu0 %792, %v699
    %v794 = vpop.permute.xlu0 %793
    %797 = vset.pattern.permute.xlu0 0
    %798 = vperm.xlu0 %797, %v700
    %v799 = vpop.permute.xlu0 %798
    %802 = vset.pattern.permute.xlu0 0
    %803 = vperm.xlu0 %802, %v701
    %v804 = vpop.permute.xlu0 %803
    %807 = vset.pattern.permute.xlu0 0
    %808 = vperm.xlu0 %807, %v702
    %v809 = vpop.permute.xlu0 %808
    %812 = vset.pattern.permute.xlu0 0
    %813 = vperm.xlu0 %812, %v703
    %v814 = vpop.permute.xlu0 %813
    %817 = vset.pattern.permute.xlu0 0
    %818 = vperm.xlu0 %817, %v704
    %v819 = vpop.permute.xlu0 %818
    %822 = vset.pattern.permute.xlu0 0
    %823 = vperm.xlu0 %822, %v705
    %v824 = vpop.permute.xlu0 %823
    %827 = vset.pattern.permute.xlu0 0
    %828 = vperm.xlu0 %827, %v706
    %v829 = vpop.permute.xlu0 %828
    %832 = vset.pattern.permute.xlu0 0
    %833 = vperm.xlu0 %832, %v707
    %v834 = vpop.permute.xlu0 %833
    %837 = vset.pattern.permute.xlu0 0
    %838 = vperm.xlu0 %837, %v708
    %v839 = vpop.permute.xlu0 %838
    %842 = vset.pattern.permute.xlu0 0
    %843 = vperm.xlu0 %842, %v709
    %v844 = vpop.permute.xlu0 %843
    %847 = vset.pattern.permute.xlu0 0
    %848 = vperm.xlu0 %847, %v710
    %v849 = vpop.permute.xlu0 %848
    %852 = vset.pattern.permute.xlu0 0
    %853 = vperm.xlu0 %852, %v711
    %v854 = vpop.permute.xlu0 %853
    %857 = vset.pattern.permute.xlu0 0
    %858 = vperm.xlu0 %857, %v712
    %v859 = vpop.permute.xlu0 %858
    %862 = vset.pattern.permute.xlu0 0
    %863 = vperm.xlu0 %862, %v713
    %v864 = vpop.permute.xlu0 %863
    %867 = vset.pattern.permute.xlu0 0
    %868 = vperm.xlu0 %867, %v714
    %v869 = vpop.permute.xlu0 %868
    %872 = vset.pattern.permute.xlu0 0
    %873 = vperm.xlu0 %872, %v715
    %v874 = vpop.permute.xlu0 %873
    %876 = vmatprep.subr.mxu0 0.0
    %877 = vmatpush1.msra.mxu0 %v588
    %878 = vmatprep.subr.mxu0 0.0
    %879 = vmatpush1.msra.mxu0 %v589
    %880 = vmatprep.subr.mxu0 0.0
    %881 = vmatpush1.msra.mxu0 %v590
    %882 = vmatprep.subr.mxu0 0.0
    %883 = vmatpush1.msra.mxu0 %v591
    %884 = vmatprep.subr.mxu0 0.0
    %885 = vmatpush1.msra.mxu0 %v592
    %886 = vmatprep.subr.mxu0 0.0
    %887 = vmatpush1.msra.mxu0 %v593
    %888 = vmatprep.subr.mxu0 0.0
    %889 = vmatpush1.msra.mxu0 %v594
    %890 = vmatprep.subr.mxu0 0.0
    %891 = vmatpush1.msra.mxu0 %v595
    %892 = vmatprep.subr.mxu0 0.0
    %893 = vmatpush1.msra.mxu0 %v596
    %894 = vmatprep.subr.mxu0 0.0
    %895 = vmatpush1.msra.mxu0 %v597
    %896 = vmatprep.subr.mxu0 0.0
    %897 = vmatpush1.msra.mxu0 %v598
    %898 = vmatprep.subr.mxu0 0.0
    %899 = vmatpush1.msra.mxu0 %v599
    %900 = vmatprep.subr.mxu0 0.0
    %901 = vmatpush1.msra.mxu0 %v600
    %902 = vmatprep.subr.mxu0 0.0
    %903 = vmatpush1.msra.mxu0 %v601
    %904 = vmatprep.subr.mxu0 0.0
    %905 = vmatpush1.msra.mxu0 %v602
    %906 = vmatprep.subr.mxu0 0.0
    %907 = vmatpush1.msra.mxu0 %v603
    %908 = vmatprep.subr.mxu0 0.0
    %909 = vmatpush1.msra.mxu0 %v604
    %910 = vmatprep.subr.mxu0 0.0
    %911 = vmatpush1.msra.mxu0 %v605
    %912 = vmatprep.subr.mxu0 0.0
    %913 = vmatpush1.msra.mxu0 %v606
    %914 = vmatprep.subr.mxu0 0.0
    %915 = vmatpush1.msra.mxu0 %v607
    %916 = vmatprep.subr.mxu0 0.0
    %917 = vmatpush1.msra.mxu0 %v608
    %918 = vmatprep.subr.mxu0 0.0
    %919 = vmatpush1.msra.mxu0 %v609
    %920 = vmatprep.subr.mxu0 0.0
    %921 = vmatpush1.msra.mxu0 %v610
    %922 = vmatprep.subr.mxu0 0.0
    %923 = vmatpush1.msra.mxu0 %v611
    %924 = vmatprep.subr.mxu0 0.0
    %925 = vmatpush1.msra.mxu0 %v612
    %926 = vmatprep.subr.mxu0 0.0
    %927 = vmatpush1.msra.mxu0 %v613
    %928 = vmatprep.subr.mxu0 0.0
    %929 = vmatpush1.msra.mxu0 %v614
    %930 = vmatprep.subr.mxu0 0.0
    %931 = vmatpush1.msra.mxu0 %v615
    %932 = vmatprep.subr.mxu0 0.0
    %933 = vmatpush1.msra.mxu0 %v616
    %934 = vmatprep.subr.mxu0 0.0
    %935 = vmatpush1.msra.mxu0 %v617
    %936 = vmatprep.subr.mxu0 0.0
    %937 = vmatpush1.msra.mxu0 %v618
    %938 = vmatprep.subr.mxu0 0.0
    %939 = vmatpush1.msra.mxu0 %v619
    %940 = vmatprep.mubr.f32.mxu0 %v621
    %941 = vmatmul.mubr.f32.gmra.mrb[0].mxu0 %v620
    %v942 = vpop.f32.mrb[0].mxu0
    %v943 = vadd.f32 %v719, %v942
    %v944 = vpop.f32.mrb[0].mxu0
    %945 = vmatprep.mubr.f32.mxu0 %v623
    %946 = vmatmul.mubr.f32.gmra.mrb[0].mxu0 %v622
    %v947 = vpop.f32.mrb[0].mxu0
    %v948 = vadd.f32 %v724, %v947
    %v949 = vpop.f32.mrb[0].mxu0
    %950 = vmatprep.mubr.f32.mxu0 %v625
    %951 = vmatmul.mubr.f32.gmra.mrb[0].mxu0 %v624
    %v952 = vpop.f32.mrb[0].mxu0
    %v953 = vadd.f32 %v729, %v952
    %v954 = vpop.f32.mrb[0].mxu0
    %955 = vmatprep.mubr.f32.mxu0 %v627
    %956 = vmatmul.mubr.f32.gmra.mrb[0].mxu0 %v626
    %v957 = vpop.f32.mrb[0].mxu0
    %v958 = vadd.f32 %v734, %v957
    %v959 = vpop.f32.mrb[0].mxu0
    %960 = vmatprep.mubr.f32.mxu0 %v629
    %961 = vmatmul.mubr.f32.gmra.mrb[0].mxu0 %v628
    %v962 = vpop.f32.mrb[0].mxu0
    %v963 = vadd.f32 %v739, %v962
    %v964 = vpop.f32.mrb[0].mxu0
    %965 = vmatprep.mubr.f32.mxu0 %v631
    %966 = vmatmul.mubr.f32.gmra.mrb[0].mxu0 %v630
    %v967 = vpop.f32.mrb[0].mxu0
    %v968 = vadd.f32 %v744, %v967
    %v969 = vpop.f32.mrb[0].mxu0
    %970 = vmatprep.mubr.f32.mxu0 %v633
    %971 = vmatmul.mubr.f32.gmra.mrb[0].mxu0 %v632
    %v972 = vpop.f32.mrb[0].mxu0
    %v973 = vadd.f32 %v749, %v972
    %v974 = vpop.f32.mrb[0].mxu0
    %975 = vmatprep.mubr.f32.mxu0 %v635
    %976 = vmatmul.mubr.f32.gmra.mrb[0].mxu0 %v634
    %v977 = vpop.f32.mrb[0].mxu0
    %v978 = vadd.f32 %v754, %v977
    %v979 = vpop.f32.mrb[0].mxu0
    %980 = vmatprep.mubr.f32.mxu0 %v637
    %981 = vmatmul.mubr.f32.gmra.mrb[0].mxu0 %v636
    %v982 = vpop.f32.mrb[0].mxu0
    %v983 = vadd.f32 %v759, %v982
    %v984 = vpop.f32.mrb[0].mxu0
    %985 = vmatprep.mubr.f32.mxu0 %v639
    %986 = vmatmul.mubr.f32.gmra.mrb[0].mxu0 %v638
    %v987 = vpop.f32.mrb[0].mxu0
    %v988 = vadd.f32 %v764, %v987
    %v989 = vpop.f32.mrb[0].mxu0
    %990 = vmatprep.mubr.f32.mxu0 %v641
    %991 = vmatmul.mubr.f32.gmra.mrb[0].mxu0 %v640
    %v992 = vpop.f32.mrb[0].mxu0
    %v993 = vadd.f32 %v769, %v992
    %v994 = vpop.f32.mrb[0].mxu0
    %995 = vmatprep.mubr.f32.mxu0 %v643
    %996 = vmatmul.mubr.f32.gmra.mrb[0].mxu0 %v642
    %v997 = vpop.f32.mrb[0].mxu0
    %v998 = vadd.f32 %v774, %v997
    %v999 = vpop.f32.mrb[0].mxu0
    %1000 = vmatprep.mubr.f32.mxu0 %v645
    %1001 = vmatmul.mubr.f32.gmra.mrb[0].mxu0 %v644
    %v1002 = vpop.f32.mrb[0].mxu0
    %v1003 = vadd.f32 %v779, %v1002
    %v1004 = vpop.f32.mrb[0].mxu0
    %1005 = vmatprep.mubr.f32.mxu0 %v647
    %1006 = vmatmul.mubr.f32.gmra.mrb[0].mxu0 %v646
    %v1007 = vpop.f32.mrb[0].mxu0
    %v1008 = vadd.f32 %v784, %v1007
    %v1009 = vpop.f32.mrb[0].mxu0
    %1010 = vmatprep.mubr.f32.mxu0 %v649
    %1011 = vmatmul.mubr.f32.gmra.mrb[0].mxu0 %v648
    %v1012 = vpop.f32.mrb[0].mxu0
    %v1013 = vadd.f32 %v789, %v1012
    %v1014 = vpop.f32.mrb[0].mxu0
    %1015 = vmatprep.mubr.f32.mxu0 %v651
    %1016 = vmatmul.mubr.f32.gmra.mrb[0].mxu0 %v650
    %v1017 = vpop.f32.mrb[0].mxu0
    %v1018 = vadd.f32 %v794, %v1017
    %v1019 = vpop.f32.mrb[0].mxu0
    %1020 = vmatprep.mubr.f32.mxu0 %v653
    %1021 = vmatmul.mubr.f32.gmra.mrb[0].mxu0 %v652
    %v1022 = vpop.f32.mrb[0].mxu0
    %v1023 = vadd.f32 %v799, %v1022
    %v1024 = vpop.f32.mrb[0].mxu0
    %1025 = vmatprep.mubr.f32.mxu0 %v655
    %1026 = vmatmul.mubr.f32.gmra.mrb[0].mxu0 %v654
    %v1027 = vpop.f32.mrb[0].mxu0
    %v1028 = vadd.f32 %v804, %v1027
    %v1029 = vpop.f32.mrb[0].mxu0
    %1030 = vmatprep.mubr.f32.mxu0 %v657
    %1031 = vmatmul.mubr.f32.gmra.mrb[0].mxu0 %v656
    %v1032 = vpop.f32.mrb[0].mxu0
    %v1033 = vadd.f32 %v809, %v1032
    %v1034 = vpop.f32.mrb[0].mxu0
    %1035 = vmatprep.mubr.f32.mxu0 %v659
    %1036 = vmatmul.mubr.f32.gmra.mrb[0].mxu0 %v658
    %v1037 = vpop.f32.mrb[0].mxu0
    %v1038 = vadd.f32 %v814, %v1037
    %v1039 = vpop.f32.mrb[0].mxu0
    %1040 = vmatprep.mubr.f32.mxu0 %v661
    %1041 = vmatmul.mubr.f32.gmra.mrb[0].mxu0 %v660
    %v1042 = vpop.f32.mrb[0].mxu0
    %v1043 = vadd.f32 %v819, %v1042
    %v1044 = vpop.f32.mrb[0].mxu0
    %1045 = vmatprep.mubr.f32.mxu0 %v663
    %1046 = vmatmul.mubr.f32.gmra.mrb[0].mxu0 %v662
    %v1047 = vpop.f32.mrb[0].mxu0
    %v1048 = vadd.f32 %v824, %v1047
    %v1049 = vpop.f32.mrb[0].mxu0
    %1050 = vmatprep.mubr.f32.mxu0 %v665
    %1051 = vmatmul.mubr.f32.gmra.mrb[0].mxu0 %v664
    %v1052 = vpop.f32.mrb[0].mxu0
    %v1053 = vadd.f32 %v829, %v1052
    %v1054 = vpop.f32.mrb[0].mxu0
    %1055 = vmatprep.mubr.f32.mxu0 %v667
    %1056 = vmatmul.mubr.f32.gmra.mrb[0].mxu0 %v666
    %v1057 = vpop.f32.mrb[0].mxu0
    %v1058 = vadd.f32 %v834, %v1057
    %v1059 = vpop.f32.mrb[0].mxu0
    %1060 = vmatprep.mubr.f32.mxu0 %v669
    %1061 = vmatmul.mubr.f32.gmra.mrb[0].mxu0 %v668
    %v1062 = vpop.f32.mrb[0].mxu0
    %v1063 = vadd.f32 %v839, %v1062
    %v1064 = vpop.f32.mrb[0].mxu0
    %1065 = vmatprep.mubr.f32.mxu0 %v671
    %1066 = vmatmul.mubr.f32.gmra.mrb[0].mxu0 %v670
    %v1067 = vpop.f32.mrb[0].mxu0
    %v1068 = vadd.f32 %v844, %v1067
    %v1069 = vpop.f32.mrb[0].mxu0
    %1070 = vmatprep.mubr.f32.mxu0 %v673
    %1071 = vmatmul.mubr.f32.gmra.mrb[0].mxu0 %v672
    %v1072 = vpop.f32.mrb[0].mxu0
    %v1073 = vadd.f32 %v849, %v1072
    %v1074 = vpop.f32.mrb[0].mxu0
    %1075 = vmatprep.mubr.f32.mxu0 %v675
    %1076 = vmatmul.mubr.f32.gmra.mrb[0].mxu0 %v674
    %v1077 = vpop.f32.mrb[0].mxu0
    %v1078 = vadd.f32 %v854, %v1077
    %v1079 = vpop.f32.mrb[0].mxu0
    %1080 = vmatprep.mubr.f32.mxu0 %v677
    %1081 = vmatmul.mubr.f32.gmra.mrb[0].mxu0 %v676
    %v1082 = vpop.f32.mrb[0].mxu0
    %v1083 = vadd.f32 %v859, %v1082
    %v1084 = vpop.f32.mrb[0].mxu0
    %1085 = vmatprep.mubr.f32.mxu0 %v679
    %1086 = vmatmul.mubr.f32.gmra.mrb[0].mxu0 %v678
    %v1087 = vpop.f32.mrb[0].mxu0
    %v1088 = vadd.f32 %v864, %v1087
    %v1089 = vpop.f32.mrb[0].mxu0
    %1090 = vmatprep.mubr.f32.mxu0 %v681
    %1091 = vmatmul.mubr.f32.gmra.mrb[0].mxu0 %v680
    %v1092 = vpop.f32.mrb[0].mxu0
    %v1093 = vadd.f32 %v869, %v1092
    %v1094 = vpop.f32.mrb[0].mxu0
    %1095 = vmatprep.mubr.f32.mxu0 %v683
    %1096 = vmatmul.mubr.f32.gmra.mrb[0].mxu0 %v682
    %v1097 = vpop.f32.mrb[0].mxu0
    %v1098 = vadd.f32 %v874, %v1097
    %v1099 = vpop.f32.mrb[0].mxu0
    %1100 = vdwg.mxu0
    %v1101 = vtanh.pop %v943
    %v1102 = vtanh.pop %v948
    %v1103 = vtanh.pop %v953
    %v1104 = vtanh.pop %v958
    %v1105 = vtanh.pop %v963
    %v1106 = vtanh.pop %v968
    %v1107 = vtanh.pop %v973
    %v1108 = vtanh.pop %v978
    %v1109 = vtanh.pop %v983
    %v1110 = vtanh.pop %v988
    %v1111 = vtanh.pop %v993
    %v1112 = vtanh.pop %v998
    %v1113 = vtanh.pop %v1003
    %v1114 = vtanh.pop %v1008
    %v1115 = vtanh.pop %v1013
    %v1116 = vtanh.pop %v1018
    %v1117 = vtanh.pop %v1023
    %v1118 = vtanh.pop %v1028
    %v1119 = vtanh.pop %v1033
    %v1120 = vtanh.pop %v1038
    %v1121 = vtanh.pop %v1043
    %v1122 = vtanh.pop %v1048
    %v1123 = vtanh.pop %v1053
    %v1124 = vtanh.pop %v1058
    %v1125 = vtanh.pop %v1063
    %v1126 = vtanh.pop %v1068
    %v1127 = vtanh.pop %v1073
    %v1128 = vtanh.pop %v1078
    %v1129 = vtanh.pop %v1083
    %v1130 = vtanh.pop %v1088
    %v1131 = vtanh.pop %v1093
    %v1132 = vtanh.pop %v1098
    %v1133 = vld [vmem:[%s3] sm:$0xff]
    %v1134 = vld [vmem:[%s3 + $0x8] sm:$0xff]
    %v1135 = vld [vmem:[%s3 + $0x10] sm:$0xff]
    %v1136 = vld [vmem:[%s3 + $0x18] sm:$0xff]
    %v1137 = vld [vmem:[%s3 + $0x20] sm:$0xff]
    %v1138 = vld [vmem:[%s3 + $0x28] sm:$0xff]
    %v1139 = vld [vmem:[%s3 + $0x30] sm:$0xff]
    %v1140 = vld [vmem:[%s3 + $0x38] sm:$0xff]
    %v1141 = vld [vmem:[%s3 + $0x40] sm:$0xff]
    %v1142 = vld [vmem:[%s3 + $0x48] sm:$0xff]
    %v1143 = vld [vmem:[%s3 + $0x50] sm:$0xff]
    %v1144 = vld [vmem:[%s3 + $0x58] sm:$0xff]
    %v1145 = vld [vmem:[%s3 + $0x60] sm:$0xff]
    %v1146 = vld [vmem:[%s3 + $0x68] sm:$0xff]
    %v1147 = vld [vmem:[%s3 + $0x70] sm:$0xff]
    %v1148 = vld [vmem:[%s3 + $0x78] sm:$0xff]
    %v1149 = vld [vmem:[%s3 + $0x80] sm:$0xff]
    %v1150 = vld [vmem:[%s3 + $0x88] sm:$0xff]
    %v1151 = vld [vmem:[%s3 + $0x90] sm:$0xff]
    %v1152 = vld [vmem:[%s3 + $0x98] sm:$0xff]
    %v1153 = vld [vmem:[%s3 + $0xa0] sm:$0xff]
    %v1154 = vld [vmem:[%s3 + $0xa8] sm:$0xff]
    %v1155 = vld [vmem:[%s3 + $0xb0] sm:$0xff]
    %v1156 = vld [vmem:[%s3 + $0xb8] sm:$0xff]
    %v1157 = vld [vmem:[%s3 + $0xc0] sm:$0xff]
    %v1158 = vld [vmem:[%s3 + $0xc8] sm:$0xff]
    %v1159 = vld [vmem:[%s3 + $0xd0] sm:$0xff]
    %v1160 = vld [vmem:[%s3 + $0xd8] sm:$0xff]
    %v1161 = vld [vmem:[%s3 + $0xe0] sm:$0xff]
    %v1162 = vld [vmem:[%s3 + $0xe8] sm:$0xff]
    %v1163 = vld [vmem:[%s3 + $0xf0] sm:$0xff]
    %v1164 = vld [vmem:[%s3 + $0xf8] sm:$0xff]
    %v1165 = vld [vmem:[%s3 + $0x100] sm:$0xff]
    %v1166 = vld [vmem:[%s3 + $0x108] sm:$0xff]
    %v1167 = vld [vmem:[%s3 + $0x110] sm:$0xff]
    %v1168 = vld [vmem:[%s3 + $0x118] sm:$0xff]
    %v1169 = vld [vmem:[%s3 + $0x120] sm:$0xff]
    %v1170 = vld [vmem:[%s3 + $0x128] sm:$0xff]
    %v1171 = vld [vmem:[%s3 + $0x130] sm:$0xff]
    %v1172 = vld [vmem:[%s3 + $0x138] sm:$0xff]
    %v1173 = vld [vmem:[%s3 + $0x140] sm:$0xff]
    %v1174 = vld [vmem:[%s3 + $0x148] sm:$0xff]
    %v1175 = vld [vmem:[%s3 + $0x150] sm:$0xff]
    %v1176 = vld [vmem:[%s3 + $0x158] sm:$0xff]
    %v1177 = vld [vmem:[%s3 + $0x160] sm:$0xff]
    %v1178 = vld [vmem:[%s3 + $0x168] sm:$0xff]
    %v1179 = vld [vmem:[%s3 + $0x170] sm:$0xff]
    %v1180 = vld [vmem:[%s3 + $0x178] sm:$0xff]
    %v1181 = vld [vmem:[%s3 + $0x180] sm:$0xff]
    %v1182 = vld [vmem:[%s3 + $0x188] sm:$0xff]
    %v1183 = vld [vmem:[%s3 + $0x190] sm:$0xff]
    %v1184 = vld [vmem:[%s3 + $0x198] sm:$0xff]
    %v1185 = vld [vmem:[%s3 + $0x1a0] sm:$0xff]
    %v1186 = vld [vmem:[%s3 + $0x1a8] sm:$0xff]
    %v1187 = vld [vmem:[%s3 + $0x1b0] sm:$0xff]
    %v1188 = vld [vmem:[%s3 + $0x1b8] sm:$0xff]
    %v1189 = vld [vmem:[%s3 + $0x1c0] sm:$0xff]
    %v1190 = vld [vmem:[%s3 + $0x1c8] sm:$0xff]
    %v1191 = vld [vmem:[%s3 + $0x1d0] sm:$0xff]
    %v1192 = vld [vmem:[%s3 + $0x1d8] sm:$0xff]
    %v1193 = vld [vmem:[%s3 + $0x1e0] sm:$0xff]
    %v1194 = vld [vmem:[%s3 + $0x1e8] sm:$0xff]
    %v1195 = vld [vmem:[%s3 + $0x1f0] sm:$0xff]
    %v1196 = vld [vmem:[%s3 + $0x1f8] sm:$0xff]
    %v1197 = vld [vmem:[%s6] sm:$0xff]
    %v1198 = vld [vmem:[%s6 + $0x8] sm:$0xff]
    %v1199 = vld [vmem:[%s6 + $0x10] sm:$0xff]
    %v1200 = vld [vmem:[%s6 + $0x18] sm:$0xff]
    %v1201 = vld [vmem:[%s6 + $0x20] sm:$0xff]
    %v1202 = vld [vmem:[%s6 + $0x28] sm:$0xff]
    %v1203 = vld [vmem:[%s6 + $0x30] sm:$0xff]
    %v1204 = vld [vmem:[%s6 + $0x38] sm:$0xff]
    %v1205 = vld [vmem:[%s6 + $0x40] sm:$0xff]
    %v1206 = vld [vmem:[%s6 + $0x48] sm:$0xff]
    %v1207 = vld [vmem:[%s6 + $0x50] sm:$0xff]
    %v1208 = vld [vmem:[%s6 + $0x58] sm:$0xff]
    %v1209 = vld [vmem:[%s6 + $0x60] sm:$0xff]
    %v1210 = vld [vmem:[%s6 + $0x68] sm:$0xff]
    %v1211 = vld [vmem:[%s6 + $0x70] sm:$0xff]
    %v1212 = vld [vmem:[%s6 + $0x78] sm:$0xff]
    %v1213 = vld [vmem:[%s6 + $0x80] sm:$0xff]
    %v1214 = vld [vmem:[%s6 + $0x88] sm:$0xff]
    %v1215 = vld [vmem:[%s6 + $0x90] sm:$0xff]
    %v1216 = vld [vmem:[%s6 + $0x98] sm:$0xff]
    %v1217 = vld [vmem:[%s6 + $0xa0] sm:$0xff]
    %v1218 = vld [vmem:[%s6 + $0xa8] sm:$0xff]
    %v1219 = vld [vmem:[%s6 + $0xb0] sm:$0xff]
    %v1220 = vld [vmem:[%s6 + $0xb8] sm:$0xff]
    %v1221 = vld [vmem:[%s6 + $0xc0] sm:$0xff]
    %v1222 = vld [vmem:[%s6 + $0xc8] sm:$0xff]
    %v1223 = vld [vmem:[%s6 + $0xd0] sm:$0xff]
    %v1224 = vld [vmem:[%s6 + $0xd8] sm:$0xff]
    %v1225 = vld [vmem:[%s6 + $0xe0] sm:$0xff]
    %v1226 = vld [vmem:[%s6 + $0xe8] sm:$0xff]
    %v1227 = vld [vmem:[%s6 + $0xf0] sm:$0xff]
    %v1228 = vld [vmem:[%s6 + $0xf8] sm:$0xff]
    %1230 = vset.pattern.permute.xlu0 0
    %1231 = vperm.xlu0 %1230, %v1197
    %v1232 = vpop.permute.xlu0 %1231
    %1235 = vset.pattern.permute.xlu0 0
    %1236 = vperm.xlu0 %1235, %v1198
    %v1237 = vpop.permute.xlu0 %1236
    %1240 = vset.pattern.permute.xlu0 0
    %1241 = vperm.xlu0 %1240, %v1199
    %v1242 = vpop.permute.xlu0 %1241
    %1245 = vset.pattern.permute.xlu0 0
    %1246 = vperm.xlu0 %1245, %v1200
    %v1247 = vpop.permute.xlu0 %1246
    %1250 = vset.pattern.permute.xlu0 0
    %1251 = vperm.xlu0 %1250, %v1201
    %v1252 = vpop.permute.xlu0 %1251
    %1255 = vset.pattern.permute.xlu0 0
    %1256 = vperm.xlu0 %1255, %v1202
    %v1257 = vpop.permute.xlu0 %1256
    %1260 = vset.pattern.permute.xlu0 0
    %1261 = vperm.xlu0 %1260, %v1203
    %v1262 = vpop.permute.xlu0 %1261
    %1265 = vset.pattern.permute.xlu0 0
    %1266 = vperm.xlu0 %1265, %v1204
    %v1267 = vpop.permute.xlu0 %1266
    %1270 = vset.pattern.permute.xlu0 0
    %1271 = vperm.xlu0 %1270, %v1205
    %v1272 = vpop.permute.xlu0 %1271
    %1275 = vset.pattern.permute.xlu0 0
    %1276 = vperm.xlu0 %1275, %v1206
    %v1277 = vpop.permute.xlu0 %1276
    %1280 = vset.pattern.permute.xlu0 0
    %1281 = vperm.xlu0 %1280, %v1207
    %v1282 = vpop.permute.xlu0 %1281
    %1285 = vset.pattern.permute.xlu0 0
    %1286 = vperm.xlu0 %1285, %v1208
    %v1287 = vpop.permute.xlu0 %1286
    %1290 = vset.pattern.permute.xlu0 0
    %1291 = vperm.xlu0 %1290, %v1209
    %v1292 = vpop.permute.xlu0 %1291
    %1295 = vset.pattern.permute.xlu0 0
    %1296 = vperm.xlu0 %1295, %v1210
    %v1297 = vpop.permute.xlu0 %1296
    %1300 = vset.pattern.permute.xlu0 0
    %1301 = vperm.xlu0 %1300, %v1211
    %v1302 = vpop.permute.xlu0 %1301
    %1305 = vset.pattern.permute.xlu0 0
    %1306 = vperm.xlu0 %1305, %v1212
    %v1307 = vpop.permute.xlu0 %1306
    %1310 = vset.pattern.permute.xlu0 0
    %1311 = vperm.xlu0 %1310, %v1213
    %v1312 = vpop.permute.xlu0 %1311
    %1315 = vset.pattern.permute.xlu0 0
    %1316 = vperm.xlu0 %1315, %v1214
    %v1317 = vpop.permute.xlu0 %1316
    %1320 = vset.pattern.permute.xlu0 0
    %1321 = vperm.xlu0 %1320, %v1215
    %v1322 = vpop.permute.xlu0 %1321
    %1325 = vset.pattern.permute.xlu0 0
    %1326 = vperm.xlu0 %1325, %v1216
    %v1327 = vpop.permute.xlu0 %1326
    %1330 = vset.pattern.permute.xlu0 0
    %1331 = vperm.xlu0 %1330, %v1217
    %v1332 = vpop.permute.xlu0 %1331
    %1335 = vset.pattern.permute.xlu0 0
    %1336 = vperm.xlu0 %1335, %v1218
    %v1337 = vpop.permute.xlu0 %1336
    %1340 = vset.pattern.permute.xlu0 0
    %1341 = vperm.xlu0 %1340, %v1219
    %v1342 = vpop.permute.xlu0 %1341
    %1345 = vset.pattern.permute.xlu0 0
    %1346 = vperm.xlu0 %1345, %v1220
    %v1347 = vpop.permute.xlu0 %1346
    %1350 = vset.pattern.permute.xlu0 0
    %1351 = vperm.xlu0 %1350, %v1221
    %v1352 = vpop.permute.xlu0 %1351
    %1355 = vset.pattern.permute.xlu0 0
    %1356 = vperm.xlu0 %1355, %v1222
    %v1357 = vpop.permute.xlu0 %1356
    %1360 = vset.pattern.permute.xlu0 0
    %1361 = vperm.xlu0 %1360, %v1223
    %v1362 = vpop.permute.xlu0 %1361
    %1365 = vset.pattern.permute.xlu0 0
    %1366 = vperm.xlu0 %1365, %v1224
    %v1367 = vpop.permute.xlu0 %1366
    %1370 = vset.pattern.permute.xlu0 0
    %1371 = vperm.xlu0 %1370, %v1225
    %v1372 = vpop.permute.xlu0 %1371
    %1375 = vset.pattern.permute.xlu0 0
    %1376 = vperm.xlu0 %1375, %v1226
    %v1377 = vpop.permute.xlu0 %1376
    %1380 = vset.pattern.permute.xlu0 0
    %1381 = vperm.xlu0 %1380, %v1227
    %v1382 = vpop.permute.xlu0 %1381
    %1385 = vset.pattern.permute.xlu0 0
    %1386 = vperm.xlu0 %1385, %v1228
    %v1387 = vpop.permute.xlu0 %1386
    %1389 = vmatprep.subr.mxu0 0.0
    %1390 = vmatpush1.msra.mxu0 %v1101
    %1391 = vmatprep.subr.mxu0 0.0
    %1392 = vmatpush1.msra.mxu0 %v1102
    %1393 = vmatprep.subr.mxu0 0.0
    %1394 = vmatpush1.msra.mxu0 %v1103
    %1395 = vmatprep.subr.mxu0 0.0
    %1396 = vmatpush1.msra.mxu0 %v1104
    %1397 = vmatprep.subr.mxu0 0.0
    %1398 = vmatpush1.msra.mxu0 %v1105
    %1399 = vmatprep.subr.mxu0 0.0
    %1400 = vmatpush1.msra.mxu0 %v1106
    %1401 = vmatprep.subr.mxu0 0.0
    %1402 = vmatpush1.msra.mxu0 %v1107
    %1403 = vmatprep.subr.mxu0 0.0
    %1404 = vmatpush1.msra.mxu0 %v1108
    %1405 = vmatprep.subr.mxu0 0.0
    %1406 = vmatpush1.msra.mxu0 %v1109
    %1407 = vmatprep.subr.mxu0 0.0
    %1408 = vmatpush1.msra.mxu0 %v1110
    %1409 = vmatprep.subr.mxu0 0.0
    %1410 = vmatpush1.msra.mxu0 %v1111
    %1411 = vmatprep.subr.mxu0 0.0
    %1412 = vmatpush1.msra.mxu0 %v1112
    %1413 = vmatprep.subr.mxu0 0.0
    %1414 = vmatpush1.msra.mxu0 %v1113
    %1415 = vmatprep.subr.mxu0 0.0
    %1416 = vmatpush1.msra.mxu0 %v1114
    %1417 = vmatprep.subr.mxu0 0.0
    %1418 = vmatpush1.msra.mxu0 %v1115
    %1419 = vmatprep.subr.mxu0 0.0
    %1420 = vmatpush1.msra.mxu0 %v1116
    %1421 = vmatprep.subr.mxu0 0.0
    %1422 = vmatpush1.msra.mxu0 %v1117
    %1423 = vmatprep.subr.mxu0 0.0
    %1424 = vmatpush1.msra.mxu0 %v1118
    %1425 = vmatprep.subr.mxu0 0.0
    %1426 = vmatpush1.msra.mxu0 %v1119
    %1427 = vmatprep.subr.mxu0 0.0
    %1428 = vmatpush1.msra.mxu0 %v1120
    %1429 = vmatprep.subr.mxu0 0.0
    %1430 = vmatpush1.msra.mxu0 %v1121
    %1431 = vmatprep.subr.mxu0 0.0
    %1432 = vmatpush1.msra.mxu0 %v1122
    %1433 = vmatprep.subr.mxu0 0.0
    %1434 = vmatpush1.msra.mxu0 %v1123
    %1435 = vmatprep.subr.mxu0 0.0
    %1436 = vmatpush1.msra.mxu0 %v1124
    %1437 = vmatprep.subr.mxu0 0.0
    %1438 = vmatpush1.msra.mxu0 %v1125
    %1439 = vmatprep.subr.mxu0 0.0
    %1440 = vmatpush1.msra.mxu0 %v1126
    %1441 = vmatprep.subr.mxu0 0.0
    %1442 = vmatpush1.msra.mxu0 %v1127
    %1443 = vmatprep.subr.mxu0 0.0
    %1444 = vmatpush1.msra.mxu0 %v1128
    %1445 = vmatprep.subr.mxu0 0.0
    %1446 = vmatpush1.msra.mxu0 %v1129
    %1447 = vmatprep.subr.mxu0 0.0
    %1448 = vmatpush1.msra.mxu0 %v1130
    %1449 = vmatprep.subr.mxu0 0.0
    %1450 = vmatpush1.msra.mxu0 %v1131
    %1451 = vmatprep.subr.mxu0 0.0
    %1452 = vmatpush1.msra.mxu0 %v1132
    %1453 = vmatprep.mubr.f32.mxu0 %v1134
    %1454 = vmatmul.mubr.f32.gmra.mrb[0].mxu0 %v1133
    %v1455 = vpop.f32.mrb[0].mxu0
    %v1456 = vadd.f32 %v1232, %v1455
    %v1457 = vpop.f32.mrb[0].mxu0
    %1458 = vmatprep.mubr.f32.mxu0 %v1136
    %1459 = vmatmul.mubr.f32.gmra.mrb[0].mxu0 %v1135
    %v1460 = vpop.f32.mrb[0].mxu0
    %v1461 = vadd.f32 %v1237, %v1460
    %v1462 = vpop.f32.mrb[0].mxu0
    %1463 = vmatprep.mubr.f32.mxu0 %v1138
    %1464 = vmatmul.mubr.f32.gmra.mrb[0].mxu0 %v1137
    %v1465 = vpop.f32.mrb[0].mxu0
    %v1466 = vadd.f32 %v1242, %v1465
    %v1467 = vpop.f32.mrb[0].mxu0
    %1468 = vmatprep.mubr.f32.mxu0 %v1140
    %1469 = vmatmul.mubr.f32.gmra.mrb[0].mxu0 %v1139
    %v1470 = vpop.f32.mrb[0].mxu0
    %v1471 = vadd.f32 %v1247, %v1470
    %v1472 = vpop.f32.mrb[0].mxu0
    %1473 = vmatprep.mubr.f32.mxu0 %v1142
    %1474 = vmatmul.mubr.f32.gmra.mrb[0].mxu0 %v1141
    %v1475 = vpop.f32.mrb[0].mxu0
    %v1476 = vadd.f32 %v1252, %v1475
    %v1477 = vpop.f32.mrb[0].mxu0
    %1478 = vmatprep.mubr.f32.mxu0 %v1144
    %1479 = vmatmul.mubr.f32.gmra.mrb[0].mxu0 %v1143
    %v1480 = vpop.f32.mrb[0].mxu0
    %v1481 = vadd.f32 %v1257, %v1480
    %v1482 = vpop.f32.mrb[0].mxu0
    %1483 = vmatprep.mubr.f32.mxu0 %v1146
    %1484 = vmatmul.mubr.f32.gmra.mrb[0].mxu0 %v1145
    %v1485 = vpop.f32.mrb[0].mxu0
    %v1486 = vadd.f32 %v1262, %v1485
    %v1487 = vpop.f32.mrb[0].mxu0
    %1488 = vmatprep.mubr.f32.mxu0 %v1148
    %1489 = vmatmul.mubr.f32.gmra.mrb[0].mxu0 %v1147
    %v1490 = vpop.f32.mrb[0].mxu0
    %v1491 = vadd.f32 %v1267, %v1490
    %v1492 = vpop.f32.mrb[0].mxu0
    %1493 = vmatprep.mubr.f32.mxu0 %v1150
    %1494 = vmatmul.mubr.f32.gmra.mrb[0].mxu0 %v1149
    %v1495 = vpop.f32.mrb[0].mxu0
    %v1496 = vadd.f32 %v1272, %v1495
    %v1497 = vpop.f32.mrb[0].mxu0
    %1498 = vmatprep.mubr.f32.mxu0 %v1152
    %1499 = vmatmul.mubr.f32.gmra.mrb[0].mxu0 %v1151
    %v1500 = vpop.f32.mrb[0].mxu0
    %v1501 = vadd.f32 %v1277, %v1500
    %v1502 = vpop.f32.mrb[0].mxu0
    %1503 = vmatprep.mubr.f32.mxu0 %v1154
    %1504 = vmatmul.mubr.f32.gmra.mrb[0].mxu0 %v1153
    %v1505 = vpop.f32.mrb[0].mxu0
    %v1506 = vadd.f32 %v1282, %v1505
    %v1507 = vpop.f32.mrb[0].mxu0
    %1508 = vmatprep.mubr.f32.mxu0 %v1156
    %1509 = vmatmul.mubr.f32.gmra.mrb[0].mxu0 %v1155
    %v1510 = vpop.f32.mrb[0].mxu0
    %v1511 = vadd.f32 %v1287, %v1510
    %v1512 = vpop.f32.mrb[0].mxu0
    %1513 = vmatprep.mubr.f32.mxu0 %v1158
    %1514 = vmatmul.mubr.f32.gmra.mrb[0].mxu0 %v1157
    %v1515 = vpop.f32.mrb[0].mxu0
    %v1516 = vadd.f32 %v1292, %v1515
    %v1517 = vpop.f32.mrb[0].mxu0
    %1518 = vmatprep.mubr.f32.mxu0 %v1160
    %1519 = vmatmul.mubr.f32.gmra.mrb[0].mxu0 %v1159
    %v1520 = vpop.f32.mrb[0].mxu0
    %v1521 = vadd.f32 %v1297, %v1520
    %v1522 = vpop.f32.mrb[0].mxu0
    %1523 = vmatprep.mubr.f32.mxu0 %v1162
    %1524 = vmatmul.mubr.f32.gmra.mrb[0].mxu0 %v1161
    %v1525 = vpop.f32.mrb[0].mxu0
    %v1526 = vadd.f32 %v1302, %v1525
    %v1527 = vpop.f32.mrb[0].mxu0
    %1528 = vmatprep.mubr.f32.mxu0 %v1164
    %1529 = vmatmul.mubr.f32.gmra.mrb[0].mxu0 %v1163
    %v1530 = vpop.f32.mrb[0].mxu0
    %v1531 = vadd.f32 %v1307, %v1530
    %v1532 = vpop.f32.mrb[0].mxu0
    %1533 = vmatprep.mubr.f32.mxu0 %v1166
    %1534 = vmatmul.mubr.f32.gmra.mrb[0].mxu0 %v1165
    %v1535 = vpop.f32.mrb[0].mxu0
    %v1536 = vadd.f32 %v1312, %v1535
    %v1537 = vpop.f32.mrb[0].mxu0
    %1538 = vmatprep.mubr.f32.mxu0 %v1168
    %1539 = vmatmul.mubr.f32.gmra.mrb[0].mxu0 %v1167
    %v1540 = vpop.f32.mrb[0].mxu0
    %v1541 = vadd.f32 %v1317, %v1540
    %v1542 = vpop.f32.mrb[0].mxu0
    %1543 = vmatprep.mubr.f32.mxu0 %v1170
    %1544 = vmatmul.mubr.f32.gmra.mrb[0].mxu0 %v1169
    %v1545 = vpop.f32.mrb[0].mxu0
    %v1546 = vadd.f32 %v1322, %v1545
    %v1547 = vpop.f32.mrb[0].mxu0
    %1548 = vmatprep.mubr.f32.mxu0 %v1172
    %1549 = vmatmul.mubr.f32.gmra.mrb[0].mxu0 %v1171
    %v1550 = vpop.f32.mrb[0].mxu0
    %v1551 = vadd.f32 %v1327, %v1550
    %v1552 = vpop.f32.mrb[0].mxu0
    %1553 = vmatprep.mubr.f32.mxu0 %v1174
    %1554 = vmatmul.mubr.f32.gmra.mrb[0].mxu0 %v1173
    %v1555 = vpop.f32.mrb[0].mxu0
    %v1556 = vadd.f32 %v1332, %v1555
    %v1557 = vpop.f32.mrb[0].mxu0
    %1558 = vmatprep.mubr.f32.mxu0 %v1176
    %1559 = vmatmul.mubr.f32.gmra.mrb[0].mxu0 %v1175
    %v1560 = vpop.f32.mrb[0].mxu0
    %v1561 = vadd.f32 %v1337, %v1560
    %v1562 = vpop.f32.mrb[0].mxu0
    %1563 = vmatprep.mubr.f32.mxu0 %v1178
    %1564 = vmatmul.mubr.f32.gmra.mrb[0].mxu0 %v1177
    %v1565 = vpop.f32.mrb[0].mxu0
    %v1566 = vadd.f32 %v1342, %v1565
    %v1567 = vpop.f32.mrb[0].mxu0
    %1568 = vmatprep.mubr.f32.mxu0 %v1180
    %1569 = vmatmul.mubr.f32.gmra.mrb[0].mxu0 %v1179
    %v1570 = vpop.f32.mrb[0].mxu0
    %v1571 = vadd.f32 %v1347, %v1570
    %v1572 = vpop.f32.mrb[0].mxu0
    %1573 = vmatprep.mubr.f32.mxu0 %v1182
    %1574 = vmatmul.mubr.f32.gmra.mrb[0].mxu0 %v1181
    %v1575 = vpop.f32.mrb[0].mxu0
    %v1576 = vadd.f32 %v1352, %v1575
    %v1577 = vpop.f32.mrb[0].mxu0
    %1578 = vmatprep.mubr.f32.mxu0 %v1184
    %1579 = vmatmul.mubr.f32.gmra.mrb[0].mxu0 %v1183
    %v1580 = vpop.f32.mrb[0].mxu0
    %v1581 = vadd.f32 %v1357, %v1580
    %v1582 = vpop.f32.mrb[0].mxu0
    %1583 = vmatprep.mubr.f32.mxu0 %v1186
    %1584 = vmatmul.mubr.f32.gmra.mrb[0].mxu0 %v1185
    %v1585 = vpop.f32.mrb[0].mxu0
    %v1586 = vadd.f32 %v1362, %v1585
    %v1587 = vpop.f32.mrb[0].mxu0
    %1588 = vmatprep.mubr.f32.mxu0 %v1188
    %1589 = vmatmul.mubr.f32.gmra.mrb[0].mxu0 %v1187
    %v1590 = vpop.f32.mrb[0].mxu0
    %v1591 = vadd.f32 %v1367, %v1590
    %v1592 = vpop.f32.mrb[0].mxu0
    %1593 = vmatprep.mubr.f32.mxu0 %v1190
    %1594 = vmatmul.mubr.f32.gmra.mrb[0].mxu0 %v1189
    %v1595 = vpop.f32.mrb[0].mxu0
    %v1596 = vadd.f32 %v1372, %v1595
    %v1597 = vpop.f32.mrb[0].mxu0
    %1598 = vmatprep.mubr.f32.mxu0 %v1192
    %1599 = vmatmul.mubr.f32.gmra.mrb[0].mxu0 %v1191
    %v1600 = vpop.f32.mrb[0].mxu0
    %v1601 = vadd.f32 %v1377, %v1600
    %v1602 = vpop.f32.mrb[0].mxu0
    %1603 = vmatprep.mubr.f32.mxu0 %v1194
    %1604 = vmatmul.mubr.f32.gmra.mrb[0].mxu0 %v1193
    %v1605 = vpop.f32.mrb[0].mxu0
    %v1606 = vadd.f32 %v1382, %v1605
    %v1607 = vpop.f32.mrb[0].mxu0
    %1608 = vmatprep.mubr.f32.mxu0 %v1196
    %1609 = vmatmul.mubr.f32.gmra.mrb[0].mxu0 %v1195
    %v1610 = vpop.f32.mrb[0].mxu0
    %v1611 = vadd.f32 %v1387, %v1610
    %v1612 = vpop.f32.mrb[0].mxu0
    %1613 = vdwg.mxu0
    %v1614 = vtanh.pop %v1456
    %v1615 = vtanh.pop %v1461
    %v1616 = vtanh.pop %v1466
    %v1617 = vtanh.pop %v1471
    %v1618 = vtanh.pop %v1476
    %v1619 = vtanh.pop %v1481
    %v1620 = vtanh.pop %v1486
    %v1621 = vtanh.pop %v1491
    %v1622 = vtanh.pop %v1496
    %v1623 = vtanh.pop %v1501
    %v1624 = vtanh.pop %v1506
    %v1625 = vtanh.pop %v1511
    %v1626 = vtanh.pop %v1516
    %v1627 = vtanh.pop %v1521
    %v1628 = vtanh.pop %v1526
    %v1629 = vtanh.pop %v1531
    %v1630 = vtanh.pop %v1536
    %v1631 = vtanh.pop %v1541
    %v1632 = vtanh.pop %v1546
    %v1633 = vtanh.pop %v1551
    %v1634 = vtanh.pop %v1556
    %v1635 = vtanh.pop %v1561
    %v1636 = vtanh.pop %v1566
    %v1637 = vtanh.pop %v1571
    %v1638 = vtanh.pop %v1576
    %v1639 = vtanh.pop %v1581
    %v1640 = vtanh.pop %v1586
    %v1641 = vtanh.pop %v1591
    %v1642 = vtanh.pop %v1596
    %v1643 = vtanh.pop %v1601
    %v1644 = vtanh.pop %v1606
    %v1645 = vtanh.pop %v1611
    %v1646 = vmax.f32 %v1614, %v1618
    %v1647 = vmax.f32 %v1615, %v1619
    %v1648 = vmax.f32 %v1616, %v1620
    %v1649 = vmax.f32 %v1617, %v1621
    %v1650 = vmax.f32 %v1646, %v1622
    %v1651 = vmax.f32 %v1647, %v1623
    %v1652 = vmax.f32 %v1648, %v1624
    %v1653 = vmax.f32 %v1649, %v1625
    %v1654 = vmax.f32 %v1650, %v1626
    %v1655 = vmax.f32 %v1651, %v1627
    %v1656 = vmax.f32 %v1652, %v1628
    %v1657 = vmax.f32 %v1653, %v1629
    %v1658 = vmax.f32 %v1654, %v1630
    %v1659 = vmax.f32 %v1655, %v1631
    %v1660 = vmax.f32 %v1656, %v1632
    %v1661 = vmax.f32 %v1657, %v1633
    %v1662 = vmax.f32 %v1658, %v1634
    %v1663 = vmax.f32 %v1659, %v1635
    %v1664 = vmax.f32 %v1660, %v1636
    %v1665 = vmax.f32 %v1661, %v1637
    %v1666 = vmax.f32 %v1662, %v1638
    %v1667 = vmax.f32 %v1663, %v1639
    %v1668 = vmax.f32 %v1664, %v1640
    %v1669 = vmax.f32 %v1665, %v1641
    %v1670 = vmax.f32 %v1666, %v1642
    %v1671 = vmax.f32 %v1667, %v1643
    %v1672 = vmax.f32 %v1668, %v1644
    %v1673 = vmax.f32 %v1669, %v1645
    %v1674 = vld [vmem:[%s7] sm:$0xff]
    %v1675 = vld [vmem:[%s7 + $0x8] sm:$0xff]
    %v1676 = vld [vmem:[%s7 + $0x10] sm:$0xff]
    %v1677 = vld [vmem:[%s7 + $0x18] sm:$0xff]
    %v1678 = vld [vmem:[%s8] sm:$0xff]
    %v1679 = vld [vmem:[%s8 + $0x8] sm:$0xff]
    %v1680 = vld [vmem:[%s8 + $0x10] sm:$0xff]
    %v1681 = vld [vmem:[%s8 + $0x18] sm:$0xff]
    %1683 = vset.pattern.permute.xlu0 0
    %1684 = vperm.xlu0 %1683, %v1678
    %v1685 = vpop.permute.xlu0 %1684
    %1688 = vset.pattern.permute.xlu0 0
    %1689 = vperm.xlu0 %1688, %v1679
    %v1690 = vpop.permute.xlu0 %1689
    %1693 = vset.pattern.permute.xlu0 0
    %1694 = vperm.xlu0 %1693, %v1680
    %v1695 = vpop.permute.xlu0 %1694
    %1698 = vset.pattern.permute.xlu0 0
    %1699 = vperm.xlu0 %1698, %v1681
    %v1700 = vpop.permute.xlu0 %1699
    %vm1702 = vcmask 261120
    %v1704 = vsel %vm1702, %v1674, 0
    %v1707 = vsel %vm1702, %v1675, 0
    %v1710 = vsel %vm1702, %v1676, 0
    %v1713 = vsel %vm1702, %v1677, 0
    %1715 = vmatprep.subr.mxu0 0.0
    %1716 = vmatpush1.msra.mxu0 %v1670
    %1717 = vmatprep.subr.mxu0 0.0
    %1718 = vmatpush1.msra.mxu0 %v1671
    %1719 = vmatprep.subr.mxu0 0.0
    %1720 = vmatpush1.msra.mxu0 %v1672
    %1721 = vmatprep.subr.mxu0 0.0
    %1722 = vmatpush1.msra.mxu0 %v1673
    %1723 = vmatprep.subr.mxu0 0.0
    %1724 = vmatpush1.msra.mxu0 0.0
    %1725 = vmatprep.subr.mxu0 0.0
    %1726 = vmatpush1.msra.mxu0 0.0
    %1727 = vmatprep.subr.mxu0 0.0
    %1728 = vmatpush1.msra.mxu0 0.0
    %1729 = vmatprep.subr.mxu0 0.0
    %1730 = vmatpush1.msra.mxu0 0.0
    %1731 = vmatprep.subr.mxu0 0.0
    %1732 = vmatpush1.msra.mxu0 0.0
    %1733 = vmatprep.subr.mxu0 0.0
    %1734 = vmatpush1.msra.mxu0 0.0
    %1735 = vmatprep.subr.mxu0 0.0
    %1736 = vmatpush1.msra.mxu0 0.0
    %1737 = vmatprep.subr.mxu0 0.0
    %1738 = vmatpush1.msra.mxu0 0.0
    %1739 = vmatprep.subr.mxu0 0.0
    %1740 = vmatpush1.msra.mxu0 0.0
    %1741 = vmatprep.subr.mxu0 0.0
    %1742 = vmatpush1.msra.mxu0 0.0
    %1743 = vmatprep.subr.mxu0 0.0
    %1744 = vmatpush1.msra.mxu0 0.0
    %1745 = vmatprep.subr.mxu0 0.0
    %1746 = vmatpush1.msra.mxu0 0.0
    %1747 = vmatprep.subr.mxu0 0.0
    %1748 = vmatpush1.msra.mxu0 0.0
    %1749 = vmatprep.subr.mxu0 0.0
    %1750 = vmatpush1.msra.mxu0 0.0
    %1751 = vmatprep.subr.mxu0 0.0
    %1752 = vmatpush1.msra.mxu0 0.0
    %1753 = vmatprep.subr.mxu0 0.0
    %1754 = vmatpush1.msra.mxu0 0.0
    %1755 = vmatprep.subr.mxu0 0.0
    %1756 = vmatpush1.msra.mxu0 0.0
    %1757 = vmatprep.subr.mxu0 0.0
    %1758 = vmatpush1.msra.mxu0 0.0
    %1759 = vmatprep.subr.mxu0 0.0
    %1760 = vmatpush1.msra.mxu0 0.0
    %1761 = vmatprep.subr.mxu0 0.0
    %1762 = vmatpush1.msra.mxu0 0.0
    %1763 = vmatprep.subr.mxu0 0.0
    %1764 = vmatpush1.msra.mxu0 0.0
    %1765 = vmatprep.subr.mxu0 0.0
    %1766 = vmatpush1.msra.mxu0 0.0
    %1767 = vmatprep.subr.mxu0 0.0
    %1768 = vmatpush1.msra.mxu0 0.0
    %1769 = vmatprep.subr.mxu0 0.0
    %1770 = vmatpush1.msra.mxu0 0.0
    %1771 = vmatprep.subr.mxu0 0.0
    %1772 = vmatpush1.msra.mxu0 0.0
    %1773 = vmatprep.subr.mxu0 0.0
    %1774 = vmatpush1.msra.mxu0 0.0
    %1775 = vmatprep.subr.mxu0 0.0
    %1776 = vmatpush1.msra.mxu0 0.0
    %1777 = vmatprep.subr.mxu0 0.0
    %1778 = vmatpush1.msra.mxu0 0.0
    %1779 = vmatprep.mubr.f32.mxu0 0.0
    %1780 = vmatmul.mubr.f32.gmra.mrb[0].mxu0 %v1704
    %v1781 = vpop.f32.mrb[0].mxu0
    %v1782 = vadd.f32 %v1685, %v1781
    %v1783 = vpop.f32.mrb[0].mxu0
    %1784 = vmatprep.mubr.f32.mxu0 0.0
    %1785 = vmatmul.mubr.f32.gmra.mrb[0].mxu0 %v1707
    %v1786 = vpop.f32.mrb[0].mxu0
    %v1787 = vadd.f32 %v1690, %v1786
    %v1788 = vpop.f32.mrb[0].mxu0
    %1789 = vmatprep.mubr.f32.mxu0 0.0
    %1790 = vmatmul.mubr.f32.gmra.mrb[0].mxu0 %v1710
    %v1791 = vpop.f32.mrb[0].mxu0
    %v1792 = vadd.f32 %v1695, %v1791
    %v1793 = vpop.f32.mrb[0].mxu0
    %1794 = vmatprep.mubr.f32.mxu0 0.0
    %1795 = vmatmul.mubr.f32.gmra.mrb[0].mxu0 %v1713
    %v1796 = vpop.f32.mrb[0].mxu0
    %v1797 = vadd.f32 %v1700, %v1796
    %v1798 = vpop.f32.mrb[0].mxu0
    %1799 = vdwg.mxu0
    %v1800 = vtanh.pop %v1782
    %v1801 = vtanh.pop %v1787
    %v1802 = vtanh.pop %v1792
    %v1803 = vtanh.pop %v1797
    %v1804 = vld [vmem:[%s9] sm:$0xff]
    %v1805 = vld [vmem:[%s9 + $0x8] sm:$0xff]
    %v1806 = vld [vmem:[%s9 + $0x10] sm:$0xff]
    %v1807 = vld [vmem:[%s9 + $0x18] sm:$0xff]
    %v1808 = vld [vmem:[%s9 + $0x20] sm:$0xff]
    %v1809 = vld [vmem:[%s10] sm:$0xff]
    %v1810 = vld [vmem:[%s10 + $0x8] sm:$0xff]
    %v1811 = vld [vmem:[%s10 + $0x10] sm:$0xff]
    %v1812 = vld [vmem:[%s10 + $0x18] sm:$0xff]
    %v1813 = vld [vmem:[%s10 + $0x20] sm:$0xff]
    %1815 = vset.pattern.permute.xlu0 0
    %1816 = vperm.xlu0 %1815, %v1809
    %v1817 = vpop.permute.xlu0 %1816
    %1820 = vset.pattern.permute.xlu0 0
    %1821 = vperm.xlu0 %1820, %v1810
    %v1822 = vpop.permute.xlu0 %1821
    %1825 = vset.pattern.permute.xlu0 0
    %1826 = vperm.xlu0 %1825, %v1811
    %v1827 = vpop.permute.xlu0 %1826
    %1830 = vset.pattern.permute.xlu0 0
    %1831 = vperm.xlu0 %1830, %v1812
    %v1832 = vpop.permute.xlu0 %1831
    %1835 = vset.pattern.permute.xlu0 0
    %1836 = vperm.xlu0 %1835, %v1813
    %v1837 = vpop.permute.xlu0 %1836
    %v1840 = vsel %vm1702, %v1804, 0
    %v1843 = vsel %vm1702, %v1805, 0
    %v1846 = vsel %vm1702, %v1806, 0
    %v1849 = vsel %vm1702, %v1807, 0
    %v1852 = vsel %vm1702, %v1808, 0
    %1854 = vmatprep.subr.mxu0 0.0
    %1855 = vmatpush1.msra.mxu0 %v1800
    %1856 = vmatprep.subr.mxu0 0.0
    %1857 = vmatpush1.msra.mxu0 %v1801
    %1858 = vmatprep.subr.mxu0 0.0
    %1859 = vmatpush1.msra.mxu0 %v1802
    %1860 = vmatprep.subr.mxu0 0.0
    %1861 = vmatpush1.msra.mxu0 %v1803
    %1862 = vmatprep.subr.mxu0 0.0
    %1863 = vmatpush1.msra.mxu0 0.0
    %1864 = vmatprep.subr.mxu0 0.0
    %1865 = vmatpush1.msra.mxu0 0.0
    %1866 = vmatprep.subr.mxu0 0.0
    %1867 = vmatpush1.msra.mxu0 0.0
    %1868 = vmatprep.subr.mxu0 0.0
    %1869 = vmatpush1.msra.mxu0 0.0
    %1870 = vmatprep.subr.mxu0 0.0
    %1871 = vmatpush1.msra.mxu0 0.0
    %1872 = vmatprep.subr.mxu0 0.0
    %1873 = vmatpush1.msra.mxu0 0.0
    %1874 = vmatprep.subr.mxu0 0.0
    %1875 = vmatpush1.msra.mxu0 0.0
    %1876 = vmatprep.subr.mxu0 0.0
    %1877 = vmatpush1.msra.mxu0 0.0
    %1878 = vmatprep.subr.mxu0 0.0
    %1879 = vmatpush1.msra.mxu0 0.0
    %1880 = vmatprep.subr.mxu0 0.0
    %1881 = vmatpush1.msra.mxu0 0.0
    %1882 = vmatprep.subr.mxu0 0.0
    %1883 = vmatpush1.msra.mxu0 0.0
    %1884 = vmatprep.subr.mxu0 0.0
    %1885 = vmatpush1.msra.mxu0 0.0
    %1886 = vmatprep.subr.mxu0 0.0
    %1887 = vmatpush1.msra.mxu0 0.0
    %1888 = vmatprep.subr.mxu0 0.0
    %1889 = vmatpush1.msra.mxu0 0.0
    %1890 = vmatprep.subr.mxu0 0.0
    %1891 = vmatpush1.msra.mxu0 0.0
    %1892 = vmatprep.subr.mxu0 0.0
    %1893 = vmatpush1.msra.mxu0 0.0
    %1894 = vmatprep.subr.mxu0 0.0
    %1895 = vmatpush1.msra.mxu0 0.0
    %1896 = vmatprep.subr.mxu0 0.0
    %1897 = vmatpush1.msra.mxu0 0.0
    %1898 = vmatprep.subr.mxu0 0.0
    %1899 = vmatpush1.msra.mxu0 0.0
    %1900 = vmatprep.subr.mxu0 0.0
    %1901 = vmatpush1.msra.mxu0 0.0
    %1902 = vmatprep.subr.mxu0 0.0
    %1903 = vmatpush1.msra.mxu0 0.0
    %1904 = vmatprep.subr.mxu0 0.0
    %1905 = vmatpush1.msra.mxu0 0.0
    %1906 = vmatprep.subr.mxu0 0.0
    %1907 = vmatpush1.msra.mxu0 0.0
    %1908 = vmatprep.subr.mxu0 0.0
    %1909 = vmatpush1.msra.mxu0 0.0
    %1910 = vmatprep.subr.mxu0 0.0
    %1911 = vmatpush1.msra.mxu0 0.0
    %1912 = vmatprep.subr.mxu0 0.0
    %1913 = vmatpush1.msra.mxu0 0.0
    %1914 = vmatprep.subr.mxu0 0.0
    %1915 = vmatpush1.msra.mxu0 0.0
    %1916 = vmatprep.subr.mxu0 0.0
    %1917 = vmatpush1.msra.mxu0 0.0
    %1918 = vmatprep.mubr.f32.mxu0 0.0
    %1919 = vmatmul.mubr.f32.gmra.mrb[0].mxu0 %v1840
    %v1920 = vpop.f32.mrb[0].mxu0
    %v1921 = vadd.f32 %v1817, %v1920
    %v1922 = vpop.f32.mrb[0].mxu0
    %1923 = vmatprep.mubr.f32.mxu0 0.0
    %1924 = vmatmul.mubr.f32.gmra.mrb[0].mxu0 %v1843
    %v1925 = vpop.f32.mrb[0].mxu0
    %v1926 = vadd.f32 %v1822, %v1925
    %v1927 = vpop.f32.mrb[0].mxu0
    %1928 = vmatprep.mubr.f32.mxu0 0.0
    %1929 = vmatmul.mubr.f32.gmra.mrb[0].mxu0 %v1846
    %v1930 = vpop.f32.mrb[0].mxu0
    %v1931 = vadd.f32 %v1827, %v1930
    %v1932 = vpop.f32.mrb[0].mxu0
    %1933 = vmatprep.mubr.f32.mxu0 0.0
    %1934 = vmatmul.mubr.f32.gmra.mrb[0].mxu0 %v1849
    %v1935 = vpop.f32.mrb[0].mxu0
    %v1936 = vadd.f32 %v1832, %v1935
    %v1937 = vpop.f32.mrb[0].mxu0
    %1938 = vmatprep.mubr.f32.mxu0 0.0
    %1939 = vmatmul.mubr.f32.gmra.mrb[0].mxu0 %v1852
    %v1940 = vpop.f32.mrb[0].mxu0
    %v1941 = vadd.f32 %v1837, %v1940
    %v1942 = vpop.f32.mrb[0].mxu0
    %1943 = vdwg.mxu0
    %1944 = vst [vmem:[#allocation2] sm:$0xff] %v1921
    %1945 = vst [vmem:[#allocation2 + $0x8] sm:$0xff] %v1926
    %1946 = vst [vmem:[#allocation2 + $0x10] sm:$0xff] %v1931
    %1947 = vst [vmem:[#allocation2 + $0x18] sm:$0xff] %v1936
    %1948 = vst [vmem:[#allocation2 + $0x20] sm:$0xff] %v1941
    // Predicated region
    $region46: #{tpu_custom_call.1} parent=1 // pred_check
      _
    $region47: #{tpu_custom_call.1} parent=1 // pred_check_branch
      %1950 = sbr.rel (0) target = $region49
    $region48: #{tpu_custom_call.1} parent=1 // pred_region
      %s1952 = ssub.s32 640, 640
      %1953 = vsyncadd [#allocation3], %s1952
      %s1954 = sshll.u32 [#allocation2], 4
      %s1955 = int_to_ptr.vmem [resolvable:$true] %s1954
      %1960 = dma.vmem_to_hbm [thread:$0]  %s1955, 640, %s11, [#allocation3], 128, 128, 8
    $region49: #{tpu_custom_call.1} parent=1 // pred_fallthru
      _
    // Predicated region
    $region50: #{tpu_custom_call.1} parent=1 // pred_check
      _
    $region51: #{tpu_custom_call.1} parent=1 // pred_check_branch
      %1962 = sbr.rel (0) target = $region53
    $region52: #{tpu_custom_call.1} parent=1 // pred_region
      %1963 = dma.done [#allocation3], 640
    $region53: #{tpu_custom_call.1} parent=1 // pred_fallthru
      _
    %1964 = vsyncpa [#allocation3], 1

</llo_original>
